<compile_context>
chip_gen: v7x
topology: tpu7x:2x2x1
jax: 0.10.0
libtpu: 0.0.40
codegen_flags: <defaults>
</compile_context>

<pallas_src>
import functools

import numpy as np

import jax
import jax.numpy as jnp
from jax import lax
from jax.experimental import pallas as pl
from jax.experimental.pallas import tpu as pltpu


# ----------------------------- fused Pallas kernel ---------------------------

def _fused_actor_kernel(*refs, k2, compute_logp):
    """Whole forward pass for one batch element (grid step).

    Activation layout is always (rows = spatial height, lanes = width*channels).
    Each convolution is a sum of row-sliced matmuls against a banded weight
    matrix prepared in `prepare_params`.
    """
    if compute_logp:
        (x_ref, m1_ref, b1_ref, m2_ref, b2_ref, wl_ref, bl_ref,
         w1_ref, bh1_ref, w2_ref, bh2_ref, act_ref,
         logits_ref, logp_ref) = refs
    else:
        (x_ref, m1_ref, b1_ref, m2_ref, b2_ref, wl_ref, bl_ref,
         w1_ref, bh1_ref, w2_ref, bh2_ref,
         logits_ref) = refs

    cdt = m1_ref.dtype                       # MXU operand dtype (bf16 or f32)
    wc = x_ref.shape[-1]                     # W * C_in lanes
    ph = x_ref.shape[1] - 1                  # pooled height (= H//2 - 1)
    oh2 = ph - k2 + 1                        # conv2 output height
    k1p = m1_ref.shape[0] // wc              # row taps of fused conv1+pool (=4)
    pwc = m2_ref.shape[0] // k2              # pooled_W * out_ch lanes
    nf_i = wl_ref.shape[0] // oh2            # ow2 * out_ch lanes per conv2 row

    # --- stage 1: conv1 (3x3) + AvgPool2d(2) folded into a 4x4 stride-2 conv.
    # Input rows are pre-split by parity in the wrapper, so stride-2 row access
    # becomes plain contiguous slices.
    x_even = x_ref[0]                        # image rows 0,2,4,...  (ph+1, wc)
    x_odd = x_ref[1]                         # image rows 1,3,5,...
    z1 = None
    for dhp in range(k1p):
        src = x_even if (dhp % 2 == 0) else x_odd
        off = dhp // 2
        piece = src[off:off + ph, :].astype(cdt)                 # (ph, wc)
        part = jnp.dot(piece, m1_ref[dhp * wc:(dhp + 1) * wc, :],
                       preferred_element_type=jnp.float32)
        z1 = part if z1 is None else z1 + part
    z1 = z1 + b1_ref[...]                    # (ph, pw*OC); no activation here

    # --- stage 2: conv2 (3x3) + ReLU, same banded-matmul trick ---
    z2 = None
    for dh in range(k2):
        piece = z1[dh:dh + oh2, :].astype(cdt)                   # (oh2, pw*OC)
        part = jnp.dot(piece, m2_ref[dh * pwc:(dh + 1) * pwc, :],
                       preferred_element_type=jnp.float32)
        z2 = part if z2 is None else z2 + part
    z2 = jnp.maximum(z2 + b2_ref[...], 0.0)  # (oh2, ow2*OC)

    # --- stage 3: Flatten (absorbed in row-permuted lin_w) + Linear + ReLU ---
    h = None
    for i in range(oh2):
        piece = z2[i:i + 1, :].astype(cdt)                       # (1, ow2*OC)
        part = jnp.dot(piece, wl_ref[i * nf_i:(i + 1) * nf_i, :],
                       preferred_element_type=jnp.float32)
        h = part if h is None else h + part
    h = jnp.maximum(h + bl_ref[...], 0.0)    # (1, hidden)

    # --- stage 4: mlp head: Linear + Tanh, Linear -> logits ---
    h = jnp.tanh(jnp.dot(h.astype(cdt), w1_ref[...],
                         preferred_element_type=jnp.float32) + bh1_ref[...])
    logits = jnp.dot(h.astype(cdt), w2_ref[...],
                     preferred_element_type=jnp.float32) + bh2_ref[...]
    logits_ref[...] = logits                 # (1, act_dim)

    if compute_logp:
        # Categorical(logits).log_prob(act) == log_softmax(logits)[act]
        m = jnp.max(logits, axis=-1, keepdims=True)
        lse = jnp.log(jnp.sum(jnp.exp(logits - m), axis=-1, keepdims=True)) + m
        logp_all = logits - lse
        col = lax.broadcasted_iota(jnp.int32, logits.shape, 1)
        hit = col == act_ref[...]            # act_ref: (1, 1) int32
        logp_ref[...] = jnp.sum(jnp.where(hit, logp_all, 0.0),
                                axis=-1, keepdims=True)


# --------------------------- parameter preparation ---------------------------

def _conv_as_matmul_matrix(w_ochw, in_w, in_c, out_w, stride):
    """(O, C, KH, KW) conv weights -> banded matrix M of shape
    (KH * in_w * in_c, out_w * O) such that, for each of the KH input-row taps,
    row-block dh of M consumes a full input row laid out as (w*in_c + c) lanes
    and produces the conv output row laid out as (j_out*O + o) lanes.
    """
    O, _, KH, KW = w_ochw.shape
    rows = KH * in_w * in_c
    cols = out_w * O

    r = np.arange(rows)
    dh = r // (in_w * in_c)
    w_in = (r % (in_w * in_c)) // in_c
    c_in = r % in_c

    col = np.arange(cols)
    j_out = col // O
    o = col % O

    dw = w_in[:, None] - stride * j_out[None, :]
    valid = (dw >= 0) & (dw < KW)
    dw_c = np.clip(dw, 0, KW - 1)

    m = w_ochw[o[None, :], c_in[:, None], dh[:, None], dw_c]     # (rows, cols)
    return jnp.where(valid, m, 0.0)


def prepare_params(params, input_shape, compute_dtype=jnp.bfloat16):
    """One-time conversion of PyTorch-style parameters into kernel-ready
    matrices (banded conv matrices, pool folded into conv1, lin_w rows permuted
    to the kernel's NHWC-like flatten order)."""
    C, H, W = input_shape
    K = 3
    OC = params["conv1_w"].shape[0]

    c1h, c1w = H - K + 1, W - K + 1
    assert c1h % 2 == 0 and c1w % 2 == 0, "pool folding assumes even conv1 output"
    ph, pw = c1h // 2, c1w // 2
    oh2, ow2 = ph - K + 1, pw - K + 1

    # Fold AvgPool2d(2) into conv1 -> effective 4x4, stride-2 convolution.
    w1 = params["conv1_w"].astype(jnp.float32)
    w_eff = 0.25 * (
        jnp.pad(w1, ((0, 0), (0, 0), (0, 1), (0, 1))) +
        jnp.pad(w1, ((0, 0), (0, 0), (1, 0), (0, 1))) +
        jnp.pad(w1, ((0, 0), (0, 0), (0, 1), (1, 0))) +
        jnp.pad(w1, ((0, 0), (0, 0), (1, 0), (1, 0))))

    m1 = _conv_as_matmul_matrix(w_eff, in_w=W, in_c=C, out_w=pw, stride=2)
    b1 = jnp.tile(params["conv1_b"].astype(jnp.float32), pw).reshape(1, pw * OC)
    m2 = _conv_as_matmul_matrix(params["conv2_w"].astype(jnp.float32),
                                in_w=pw, in_c=OC, out_w=ow2, stride=1)
    b2 = jnp.tile(params["conv2_b"].astype(jnp.float32), ow2).reshape(1, ow2 * OC)

    # Permute lin_w rows: PyTorch flatten order (o, i, j) -> kernel (i, j, o).
    n_flat = OC * oh2 * ow2
    r = np.arange(n_flat)
    i = r // (ow2 * OC)
    rem = r % (ow2 * OC)
    j = rem // OC
    o = rem % OC
    src = o * (oh2 * ow2) + i * ow2 + j
    wl = params["lin_w"][src, :]

    return {
        "m1": m1.astype(compute_dtype),
        "b1": b1,
        "m2": m2.astype(compute_dtype),
        "b2": b2,
        "wl": wl.astype(compute_dtype),
        "bl": params["lin_b"].reshape(1, -1).astype(jnp.float32),
        "w1": params["mlp1_w"].astype(compute_dtype),
        "bh1": params["mlp1_b"].reshape(1, -1).astype(jnp.float32),
        "w2": params["mlp2_w"].astype(compute_dtype),
        "bh2": params["mlp2_b"].reshape(1, -1).astype(jnp.float32),
    }


# --------------------------------- forward -----------------------------------

@jax.jit
def cnn_categorical_actor_forward(kp, obs_nchw, act=None):
    """Returns (logits, logp_a); logp_a is None when act is None (mirrors the
    PyTorch forward, which returns the Categorical distribution + optional
    log-prob)."""
    obs = obs_nchw.astype(jnp.float32)
    B, C, H, W = obs.shape
    A = kp["w2"].shape[1]
    K2 = 3

    # NHWC, rows = image height, lanes = width*channels; split rows by parity so
    # the fused stride-2 conv needs only contiguous slices inside the kernel.
    x = jnp.transpose(obs, (0, 2, 3, 1)).reshape(B, H, W * C)
    x_eo = x.reshape(B, H // 2, 2, W * C).transpose(0, 2, 1, 3)   # (B, 2, H//2, W*C)

    compute_logp = act is not None
    kernel = functools.partial(_fused_actor_kernel, k2=K2,
                               compute_logp=compute_logp)

    weight_names = ("m1", "b1", "m2", "b2", "wl", "bl", "w1", "bh1", "w2", "bh2")
    in_specs = [pl.BlockSpec((None, 2, H // 2, W * C), lambda b: (b, 0, 0, 0))]
    in_specs += [pl.BlockSpec(kp[name].shape, lambda b: (0, 0))
                 for name in weight_names]
    args = [x_eo] + [kp[name] for name in weight_names]

    out_specs = [pl.BlockSpec((None, 1, A), lambda b: (b, 0, 0))]
    out_shapes = [jax.ShapeDtypeStruct((B, 1, A), jnp.float32)]
    if compute_logp:
        in_specs.append(pl.BlockSpec((None, 1, 1), lambda b: (b, 0, 0)))
        args.append(act.reshape(B, 1, 1).astype(jnp.int32))
        out_specs.append(pl.BlockSpec((None, 1, 1), lambda b: (b, 0, 0)))
        out_shapes.append(jax.ShapeDtypeStruct((B, 1, 1), jnp.float32))

    outs = pl.pallas_call(
        kernel,
        grid=(B,),
        in_specs=in_specs,
        out_specs=tuple(out_specs),
        out_shape=tuple(out_shapes),
        compiler_params=pltpu.CompilerParams(
            dimension_semantics=("parallel",)),
    )(*args)

    logits = outs[0][:, 0, :]
    logp_a = outs[1][:, 0, 0] if compute_logp else None
    return logits, logp_a


# -------------------------- init & pure-JAX reference ------------------------

def init_params(key, input_shape, act_dim, hidden=256, out_ch=32, k=3):
    """Deterministic synthetic init (shapes match the PyTorch module; linear
    weights stored as (in, out)).  Orthogonal/xavier init replaced by scaled
    normals; biases = 0."""
    C, H, W = input_shape
    h1, w1 = H - k + 1, W - k + 1
    hp, wp = h1 // 2, w1 // 2
    h2, w2 = hp - k + 1, wp - k + 1
    n_flatten = out_ch * h2 * w2

    ks = jax.random.split(key, 5)
    s = 0.05
    return {
        "conv1_w": s * jax.random.normal(ks[0], (out_ch, C, k, k), jnp.float32),
        "conv1_b": jnp.zeros((out_ch,), jnp.float32),
        "conv2_w": s * jax.random.normal(ks[1], (out_ch, out_ch, k, k), jnp.float32),
        "conv2_b": jnp.zeros((out_ch,), jnp.float32),
        "lin_w": s * jax.random.normal(ks[2], (n_flatten, hidden), jnp.float32),
        "lin_b": jnp.zeros((hidden,), jnp.float32),
        "mlp1_w": s * jax.random.normal(ks[3], (hidden, hidden), jnp.float32),
        "mlp1_b": jnp.zeros((hidden,), jnp.float32),
        "mlp2_w": s * jax.random.normal(ks[4], (hidden, act_dim), jnp.float32),
        "mlp2_b": jnp.zeros((act_dim,), jnp.float32),
    }


def reference_forward(params, obs_nchw, act):
    """Plain-XLA reference of the PyTorch module, for a structural check."""
    dn = ("NCHW", "OIHW", "NCHW")
    y = lax.conv_general_dilated(obs_nchw, params["conv1_w"], (1, 1), "VALID",
                                 dimension_numbers=dn)
    y = y + params["conv1_b"][None, :, None, None]
    y = lax.reduce_window(y, 0.0, lax.add, (1, 1, 2, 2), (1, 1, 2, 2), "VALID") / 4.0
    y = lax.conv_general_dilated(y, params["conv2_w"], (1, 1), "VALID",
                                 dimension_numbers=dn)
    y = jnp.maximum(y + params["conv2_b"][None, :, None, None], 0.0)
    f = y.reshape(y.shape[0], -1)                       # PyTorch (C,H,W) flatten
    h = jnp.maximum(f @ params["lin_w"] + params["lin_b"], 0.0)
    h = jnp.tanh(h @ params["mlp1_w"] + params["mlp1_b"])
    logits = h @ params["mlp2_w"] + params["mlp2_b"]
    logp = jax.nn.log_softmax(logits, axis=-1)
    logp_a = jnp.take_along_axis(logp, act[:, None], axis=1)[:, 0]
    return logits, logp_a


# ----------------------------------- main -------------------------------------

if __name__ == "__main__":
    B, C, H, W = 2, 4, 16, 16
    act_dim = 8

    key = jax.random.PRNGKey(0)
    k_obs, k_param = jax.random.split(key)
    obs = jax.random.normal(k_obs, (B, C, H, W), jnp.float32)   # NCHW, like PyTorch
    act = jnp.array([1, 3], dtype=jnp.int32)

    params = init_params(k_param, (C, H, W), act_dim)
    ref_logits, ref_logp = reference_forward(params, obs, act)

    # f32-operand kernel variant: structural check against the XLA reference.
    kp32 = prepare_params(params, (C, H, W), compute_dtype=jnp.float32)
    logits32, logp32 = cnn_categorical_actor_forward(kp32, obs, act)
    np.testing.assert_allclose(np.asarray(logits32), np.asarray(ref_logits),
                               rtol=5e-2, atol=5e-3)
    np.testing.assert_allclose(np.asarray(logp32), np.asarray(ref_logp),
                               rtol=5e-2, atol=5e-3)

    # Default (bf16 MXU operands) variant.
    kp = prepare_params(params, (C, H, W))
    logits, logp_a = cnn_categorical_actor_forward(kp, obs, act)
    logits = jax.block_until_ready(logits)
    logp_a = jax.block_until_ready(logp_a)

    assert logits.shape == (B, act_dim)
    assert logp_a.shape == (B,)
    assert bool(jnp.all(jnp.isfinite(logits))) and bool(jnp.all(logp_a <= 0.0))
    np.testing.assert_allclose(np.asarray(logits), np.asarray(ref_logits),
                               rtol=1.5e-1, atol=2e-2)

    # Inference path (act=None): the log-prob branch is not emitted at all.
    logits_inf, logp_none = cnn_categorical_actor_forward(kp, obs)
    jax.block_until_ready(logits_inf)
    assert logp_none is None and logits_inf.shape == (B, act_dim)

    print("KERNEL_OK")
</pallas_src>

<mosaic_0001>
module attributes {stable_mosaic.version = 11 : i64} {
  func.func @_fused_actor_kernel(%arg0: i32, %arg1: memref<1x2x8x64xf32, #tpu.memory_space<vmem>>, %arg2: memref<256x224xf32, #tpu.memory_space<vmem>>, %arg3: memref<1x224xf32, #tpu.memory_space<vmem>>, %arg4: memref<672x160xf32, #tpu.memory_space<vmem>>, %arg5: memref<1x160xf32, #tpu.memory_space<vmem>>, %arg6: memref<800x256xf32, #tpu.memory_space<vmem>>, %arg7: memref<1x256xf32, #tpu.memory_space<vmem>>, %arg8: memref<256x256xf32, #tpu.memory_space<vmem>>, %arg9: memref<1x256xf32, #tpu.memory_space<vmem>>, %arg10: memref<256x8xf32, #tpu.memory_space<vmem>>, %arg11: memref<1x8xf32, #tpu.memory_space<vmem>>, %arg12: memref<1x1x1xi32, #tpu.memory_space<vmem>>, %arg13: memref<1x1x8xf32, #tpu.memory_space<vmem>>, %arg14: memref<1x1x1xf32, #tpu.memory_space<vmem>>) attributes {dimension_semantics = [#tpu.dimension_semantics<parallel>], iteration_bounds = array<i64: 2>, scalar_prefetch = 0 : i64, scratch_operands = 0 : i64, tpu.core_type = #tpu.core_type<tc>, window_params = [{transform_indices = @transform_0, window_bounds = array<i64: 1, 2, 8, 64>}, {pipeline_mode = #tpu.pipeline_mode<synchronous>, transform_indices = @transform_1, window_bounds = array<i64: 256, 224>}, {pipeline_mode = #tpu.pipeline_mode<synchronous>, transform_indices = @transform_2, window_bounds = array<i64: 1, 224>}, {pipeline_mode = #tpu.pipeline_mode<synchronous>, transform_indices = @transform_3, window_bounds = array<i64: 672, 160>}, {pipeline_mode = #tpu.pipeline_mode<synchronous>, transform_indices = @transform_4, window_bounds = array<i64: 1, 160>}, {pipeline_mode = #tpu.pipeline_mode<synchronous>, transform_indices = @transform_5, window_bounds = array<i64: 800, 256>}, {pipeline_mode = #tpu.pipeline_mode<synchronous>, transform_indices = @transform_6, window_bounds = array<i64: 1, 256>}, {pipeline_mode = #tpu.pipeline_mode<synchronous>, transform_indices = @transform_7, window_bounds = array<i64: 256, 256>}, {pipeline_mode = #tpu.pipeline_mode<synchronous>, transform_indices = @transform_8, window_bounds = array<i64: 1, 256>}, {pipeline_mode = #tpu.pipeline_mode<synchronous>, transform_indices = @transform_9, window_bounds = array<i64: 256, 8>}, {pipeline_mode = #tpu.pipeline_mode<synchronous>, transform_indices = @transform_10, window_bounds = array<i64: 1, 8>}, {transform_indices = @transform_11, window_bounds = array<i64: 1, 1, 1>}, {transform_indices = @transform_12, window_bounds = array<i64: 1, 1, 8>}, {transform_indices = @transform_13, window_bounds = array<i64: 1, 1, 1>}]} {
    %c0 = arith.constant 0 : index
    %c0_0 = arith.constant 0 : index
    %c0_1 = arith.constant 0 : index
    %c0_2 = arith.constant 0 : index
    %0 = vector.load %arg1[%c0, %c0_0, %c0_1, %c0_2] : memref<1x2x8x64xf32, #tpu.memory_space<vmem>>, vector<1x1x8x64xf32>
    %1 = vector.shape_cast %0 : vector<1x1x8x64xf32> to vector<8x64xf32>
    %c0_3 = arith.constant 0 : index
    %c1 = arith.constant 1 : index
    %c0_4 = arith.constant 0 : index
    %c0_5 = arith.constant 0 : index
    %2 = vector.load %arg1[%c0_3, %c1, %c0_4, %c0_5] : memref<1x2x8x64xf32, #tpu.memory_space<vmem>>, vector<1x1x8x64xf32>
    %3 = vector.shape_cast %2 : vector<1x1x8x64xf32> to vector<8x64xf32>
    %4 = vector.extract_strided_slice %1 {offsets = [0, 0], sizes = [7, 64], strides = [1, 1]} : vector<8x64xf32> to vector<7x64xf32>
    %c0_6 = arith.constant 0 : index
    %c0_7 = arith.constant 0 : index
    %5 = vector.load %arg2[%c0_6, %c0_7] : memref<256x224xf32, #tpu.memory_space<vmem>>, vector<64x224xf32>
    %cst = arith.constant dense<0.000000e+00> : vector<7x224xf32>
    %6 = tpu.matmul %4, %5, %cst {dimension_numbers = #tpu.dot_dimension_numbers<[1], [0], [0], [1], [0, 0, 1, 1], [], []>} : vector<7x64xf32>, vector<64x224xf32>, vector<7x224xf32> -> vector<7x224xf32>
    %7 = vector.extract_strided_slice %3 {offsets = [0, 0], sizes = [7, 64], strides = [1, 1]} : vector<8x64xf32> to vector<7x64xf32>
    %c64 = arith.constant 64 : index
    %c0_8 = arith.constant 0 : index
    %8 = vector.load %arg2[%c64, %c0_8] : memref<256x224xf32, #tpu.memory_space<vmem>>, vector<64x224xf32>
    %cst_9 = arith.constant dense<0.000000e+00> : vector<7x224xf32>
    %9 = tpu.matmul %7, %8, %cst_9 {dimension_numbers = #tpu.dot_dimension_numbers<[1], [0], [0], [1], [0, 0, 1, 1], [], []>} : vector<7x64xf32>, vector<64x224xf32>, vector<7x224xf32> -> vector<7x224xf32>
    %10 = arith.addf %6, %9 : vector<7x224xf32>
    %11 = vector.extract_strided_slice %1 {offsets = [1, 0], sizes = [7, 64], strides = [1, 1]} : vector<8x64xf32> to vector<7x64xf32>
    %c128 = arith.constant 128 : index
    %c0_10 = arith.constant 0 : index
    %12 = vector.load %arg2[%c128, %c0_10] : memref<256x224xf32, #tpu.memory_space<vmem>>, vector<64x224xf32>
    %cst_11 = arith.constant dense<0.000000e+00> : vector<7x224xf32>
    %13 = tpu.matmul %11, %12, %cst_11 {dimension_numbers = #tpu.dot_dimension_numbers<[1], [0], [0], [1], [0, 0, 1, 1], [], []>} : vector<7x64xf32>, vector<64x224xf32>, vector<7x224xf32> -> vector<7x224xf32>
    %14 = arith.addf %10, %13 : vector<7x224xf32>
    %15 = vector.extract_strided_slice %3 {offsets = [1, 0], sizes = [7, 64], strides = [1, 1]} : vector<8x64xf32> to vector<7x64xf32>
    %c192 = arith.constant 192 : index
    %c0_12 = arith.constant 0 : index
    %16 = vector.load %arg2[%c192, %c0_12] : memref<256x224xf32, #tpu.memory_space<vmem>>, vector<64x224xf32>
    %cst_13 = arith.constant dense<0.000000e+00> : vector<7x224xf32>
    %17 = tpu.matmul %15, %16, %cst_13 {dimension_numbers = #tpu.dot_dimension_numbers<[1], [0], [0], [1], [0, 0, 1, 1], [], []>} : vector<7x64xf32>, vector<64x224xf32>, vector<7x224xf32> -> vector<7x224xf32>
    %18 = arith.addf %14, %17 : vector<7x224xf32>
    %c0_14 = arith.constant 0 : index
    %c0_15 = arith.constant 0 : index
    %19 = vector.load %arg3[%c0_14, %c0_15] : memref<1x224xf32, #tpu.memory_space<vmem>>, vector<1x224xf32>
    %20 = vector.broadcast %19 : vector<1x224xf32> to vector<7x224xf32>
    %21 = arith.addf %18, %20 : vector<7x224xf32>
    %22 = vector.extract_strided_slice %21 {offsets = [0, 0], sizes = [5, 224], strides = [1, 1]} : vector<7x224xf32> to vector<5x224xf32>
    %c0_16 = arith.constant 0 : index
    %c0_17 = arith.constant 0 : index
    %23 = vector.load %arg4[%c0_16, %c0_17] : memref<672x160xf32, #tpu.memory_space<vmem>>, vector<224x160xf32>
    %cst_18 = arith.constant dense<0.000000e+00> : vector<5x160xf32>
    %24 = tpu.matmul %22, %23, %cst_18 {dimension_numbers = #tpu.dot_dimension_numbers<[1], [0], [0], [1], [0, 0, 1, 1], [], []>} : vector<5x224xf32>, vector<224x160xf32>, vector<5x160xf32> -> vector<5x160xf32>
    %25 = vector.extract_strided_slice %21 {offsets = [1, 0], sizes = [5, 224], strides = [1, 1]} : vector<7x224xf32> to vector<5x224xf32>
    %c224 = arith.constant 224 : index
    %c0_19 = arith.constant 0 : index
    %26 = vector.load %arg4[%c224, %c0_19] : memref<672x160xf32, #tpu.memory_space<vmem>>, vector<224x160xf32>
    %cst_20 = arith.constant dense<0.000000e+00> : vector<5x160xf32>
    %27 = tpu.matmul %25, %26, %cst_20 {dimension_numbers = #tpu.dot_dimension_numbers<[1], [0], [0], [1], [0, 0, 1, 1], [], []>} : vector<5x224xf32>, vector<224x160xf32>, vector<5x160xf32> -> vector<5x160xf32>
    %28 = arith.addf %24, %27 : vector<5x160xf32>
    %29 = vector.extract_strided_slice %21 {offsets = [2, 0], sizes = [5, 224], strides = [1, 1]} : vector<7x224xf32> to vector<5x224xf32>
    %c448 = arith.constant 448 : index
    %c0_21 = arith.constant 0 : index
    %30 = vector.load %arg4[%c448, %c0_21] : memref<672x160xf32, #tpu.memory_space<vmem>>, vector<224x160xf32>
    %cst_22 = arith.constant dense<0.000000e+00> : vector<5x160xf32>
    %31 = tpu.matmul %29, %30, %cst_22 {dimension_numbers = #tpu.dot_dimension_numbers<[1], [0], [0], [1], [0, 0, 1, 1], [], []>} : vector<5x224xf32>, vector<224x160xf32>, vector<5x160xf32> -> vector<5x160xf32>
    %32 = arith.addf %28, %31 : vector<5x160xf32>
    %c0_23 = arith.constant 0 : index
    %c0_24 = arith.constant 0 : index
    %33 = vector.load %arg5[%c0_23, %c0_24] : memref<1x160xf32, #tpu.memory_space<vmem>>, vector<1x160xf32>
    %34 = vector.broadcast %33 : vector<1x160xf32> to vector<5x160xf32>
    %35 = arith.addf %32, %34 : vector<5x160xf32>
    %cst_25 = arith.constant 0.000000e+00 : f32
    %36 = vector.broadcast %cst_25 : f32 to vector<5x160xf32>
    %37 = arith.maximumf %35, %36 : vector<5x160xf32>
    %38 = vector.extract_strided_slice %37 {offsets = [0, 0], sizes = [1, 160], strides = [1, 1]} : vector<5x160xf32> to vector<1x160xf32>
    %c0_26 = arith.constant 0 : index
    %c0_27 = arith.constant 0 : index
    %39 = vector.load %arg6[%c0_26, %c0_27] : memref<800x256xf32, #tpu.memory_space<vmem>>, vector<160x256xf32>
    %cst_28 = arith.constant dense<0.000000e+00> : vector<1x256xf32>
    %40 = tpu.matmul %38, %39, %cst_28 {dimension_numbers = #tpu.dot_dimension_numbers<[1], [0], [0], [1], [0, 0, 1, 1], [], []>} : vector<1x160xf32>, vector<160x256xf32>, vector<1x256xf32> -> vector<1x256xf32>
    %41 = vector.extract_strided_slice %37 {offsets = [1, 0], sizes = [1, 160], strides = [1, 1]} : vector<5x160xf32> to vector<1x160xf32>
    %c160 = arith.constant 160 : index
    %c0_29 = arith.constant 0 : index
    %42 = vector.load %arg6[%c160, %c0_29] : memref<800x256xf32, #tpu.memory_space<vmem>>, vector<160x256xf32>
    %cst_30 = arith.constant dense<0.000000e+00> : vector<1x256xf32>
    %43 = tpu.matmul %41, %42, %cst_30 {dimension_numbers = #tpu.dot_dimension_numbers<[1], [0], [0], [1], [0, 0, 1, 1], [], []>} : vector<1x160xf32>, vector<160x256xf32>, vector<1x256xf32> -> vector<1x256xf32>
    %44 = arith.addf %40, %43 : vector<1x256xf32>
    %45 = vector.extract_strided_slice %37 {offsets = [2, 0], sizes = [1, 160], strides = [1, 1]} : vector<5x160xf32> to vector<1x160xf32>
    %c320 = arith.constant 320 : index
    %c0_31 = arith.constant 0 : index
    %46 = vector.load %arg6[%c320, %c0_31] : memref<800x256xf32, #tpu.memory_space<vmem>>, vector<160x256xf32>
    %cst_32 = arith.constant dense<0.000000e+00> : vector<1x256xf32>
    %47 = tpu.matmul %45, %46, %cst_32 {dimension_numbers = #tpu.dot_dimension_numbers<[1], [0], [0], [1], [0, 0, 1, 1], [], []>} : vector<1x160xf32>, vector<160x256xf32>, vector<1x256xf32> -> vector<1x256xf32>
    %48 = arith.addf %44, %47 : vector<1x256xf32>
    %49 = vector.extract_strided_slice %37 {offsets = [3, 0], sizes = [1, 160], strides = [1, 1]} : vector<5x160xf32> to vector<1x160xf32>
    %c480 = arith.constant 480 : index
    %c0_33 = arith.constant 0 : index
    %50 = vector.load %arg6[%c480, %c0_33] : memref<800x256xf32, #tpu.memory_space<vmem>>, vector<160x256xf32>
    %cst_34 = arith.constant dense<0.000000e+00> : vector<1x256xf32>
    %51 = tpu.matmul %49, %50, %cst_34 {dimension_numbers = #tpu.dot_dimension_numbers<[1], [0], [0], [1], [0, 0, 1, 1], [], []>} : vector<1x160xf32>, vector<160x256xf32>, vector<1x256xf32> -> vector<1x256xf32>
    %52 = arith.addf %48, %51 : vector<1x256xf32>
    %53 = vector.extract_strided_slice %37 {offsets = [4, 0], sizes = [1, 160], strides = [1, 1]} : vector<5x160xf32> to vector<1x160xf32>
    %c640 = arith.constant 640 : index
    %c0_35 = arith.constant 0 : index
    %54 = vector.load %arg6[%c640, %c0_35] : memref<800x256xf32, #tpu.memory_space<vmem>>, vector<160x256xf32>
    %cst_36 = arith.constant dense<0.000000e+00> : vector<1x256xf32>
    %55 = tpu.matmul %53, %54, %cst_36 {dimension_numbers = #tpu.dot_dimension_numbers<[1], [0], [0], [1], [0, 0, 1, 1], [], []>} : vector<1x160xf32>, vector<160x256xf32>, vector<1x256xf32> -> vector<1x256xf32>
    %56 = arith.addf %52, %55 : vector<1x256xf32>
    %c0_37 = arith.constant 0 : index
    %c0_38 = arith.constant 0 : index
    %57 = vector.load %arg7[%c0_37, %c0_38] : memref<1x256xf32, #tpu.memory_space<vmem>>, vector<1x256xf32>
    %58 = arith.addf %56, %57 : vector<1x256xf32>
    %cst_39 = arith.constant 0.000000e+00 : f32
    %59 = vector.broadcast %cst_39 : f32 to vector<1x256xf32>
    %60 = arith.maximumf %58, %59 : vector<1x256xf32>
    %c0_40 = arith.constant 0 : index
    %c0_41 = arith.constant 0 : index
    %61 = vector.load %arg8[%c0_40, %c0_41] : memref<256x256xf32, #tpu.memory_space<vmem>>, vector<256x256xf32>
    %cst_42 = arith.constant dense<0.000000e+00> : vector<1x256xf32>
    %62 = tpu.matmul %60, %61, %cst_42 {dimension_numbers = #tpu.dot_dimension_numbers<[1], [0], [0], [1], [0, 0, 1, 1], [], []>} : vector<1x256xf32>, vector<256x256xf32>, vector<1x256xf32> -> vector<1x256xf32>
    %c0_43 = arith.constant 0 : index
    %c0_44 = arith.constant 0 : index
    %63 = vector.load %arg9[%c0_43, %c0_44] : memref<1x256xf32, #tpu.memory_space<vmem>>, vector<1x256xf32>
    %64 = arith.addf %62, %63 : vector<1x256xf32>
    %65 = math.tanh %64 : vector<1x256xf32>
    %c0_45 = arith.constant 0 : index
    %c0_46 = arith.constant 0 : index
    %66 = vector.load %arg10[%c0_45, %c0_46] : memref<256x8xf32, #tpu.memory_space<vmem>>, vector<256x8xf32>
    %cst_47 = arith.constant dense<0.000000e+00> : vector<1x8xf32>
    %67 = tpu.matmul %65, %66, %cst_47 {dimension_numbers = #tpu.dot_dimension_numbers<[1], [0], [0], [1], [0, 0, 1, 1], [], []>} : vector<1x256xf32>, vector<256x8xf32>, vector<1x8xf32> -> vector<1x8xf32>
    %c0_48 = arith.constant 0 : index
    %c0_49 = arith.constant 0 : index
    %68 = vector.load %arg11[%c0_48, %c0_49] : memref<1x8xf32, #tpu.memory_space<vmem>>, vector<1x8xf32>
    %69 = arith.addf %67, %68 : vector<1x8xf32>
    %c0_50 = arith.constant 0 : index
    %c0_51 = arith.constant 0 : index
    %c0_52 = arith.constant 0 : index
    %70 = vector.load %arg13[%c0_50, %c0_51, %c0_52] : memref<1x1x8xf32, #tpu.memory_space<vmem>>, vector<1x1x8xf32>
    %71 = vector.shape_cast %70 : vector<1x1x8xf32> to vector<1x8xf32>
    %72 = vector.shape_cast %69 : vector<1x8xf32> to vector<1x1x8xf32>
    tpu.vector_store %arg13[%c0_50, %c0_51, %c0_52], %72 {strides = array<i32>} : memref<1x1x8xf32, #tpu.memory_space<vmem>>, vector<1x1x8xf32>,
    %cst_53 = arith.constant dense<0xFF800000> : vector<1xf32>
    %73 = vector.multi_reduction <maximumf>, %69, %cst_53 [1] : vector<1x8xf32> to vector<1xf32>
    %74 = vector.shape_cast %73 : vector<1xf32> to vector<1x1xf32>
    %75 = vector.broadcast %74 : vector<1x1xf32> to vector<1x8xf32>
    %76 = arith.subf %69, %75 : vector<1x8xf32>
    %77 = math.exp %76 : vector<1x8xf32>
    %cst_54 = arith.constant dense<0.000000e+00> : vector<1xf32>
    %78 = vector.multi_reduction <add>, %77, %cst_54 [1] : vector<1x8xf32> to vector<1xf32>
    %79 = vector.shape_cast %78 : vector<1xf32> to vector<1x1xf32>
    %80 = math.log %79 : vector<1x1xf32>
    %81 = arith.addf %80, %74 : vector<1x1xf32>
    %82 = vector.broadcast %81 : vector<1x1xf32> to vector<1x8xf32>
    %83 = arith.subf %69, %82 : vector<1x8xf32>
    %84 = tpu.iota {dimensions = array<i32: 1>} : vector<1x8xi32>
    %c0_55 = arith.constant 0 : index
    %c0_56 = arith.constant 0 : index
    %c0_57 = arith.constant 0 : index
    %85 = vector.load %arg12[%c0_55, %c0_56, %c0_57] : memref<1x1x1xi32, #tpu.memory_space<vmem>>, vector<1x1x1xi32>
    %86 = vector.shape_cast %85 : vector<1x1x1xi32> to vector<1x1xi32>
    %87 = vector.broadcast %86 : vector<1x1xi32> to vector<1x8xi32>
    %88 = arith.cmpi eq, %84, %87 : vector<1x8xi32>
    %cst_58 = arith.constant 0.000000e+00 : f32
    %89 = vector.broadcast %cst_58 : f32 to vector<1x8xf32>
    %90 = arith.select %88, %83, %89 : vector<1x8xi1>, vector<1x8xf32>
    %cst_59 = arith.constant dense<0.000000e+00> : vector<1xf32>
    %91 = vector.multi_reduction <add>, %90, %cst_59 [1] : vector<1x8xf32> to vector<1xf32>
    %92 = vector.shape_cast %91 : vector<1xf32> to vector<1x1xf32>
    %c0_60 = arith.constant 0 : index
    %c0_61 = arith.constant 0 : index
    %c0_62 = arith.constant 0 : index
    %93 = vector.load %arg14[%c0_60, %c0_61, %c0_62] : memref<1x1x1xf32, #tpu.memory_space<vmem>>, vector<1x1x1xf32>
    %94 = vector.shape_cast %93 : vector<1x1x1xf32> to vector<1x1xf32>
    %95 = vector.shape_cast %92 : vector<1x1xf32> to vector<1x1x1xf32>
    tpu.vector_store %arg14[%c0_60, %c0_61, %c0_62], %95 {strides = array<i32>} : memref<1x1x1xf32, #tpu.memory_space<vmem>>, vector<1x1x1xf32>,
    return
  }
  func.func @transform_0(%arg0: i32) -> (i32, i32, i32, i32) {
    %c0_i32 = arith.constant 0 : i32
    %c0_i32_0 = arith.constant 0 : i32
    %c0_i32_1 = arith.constant 0 : i32
    %c0_i32_2 = arith.constant 0 : i32
    return %arg0, %c0_i32, %c0_i32_0, %c0_i32_1 : i32, i32, i32, i32
  }
  func.func @transform_1(%arg0: i32) -> (i32, i32) {
    %c0_i32 = arith.constant 0 : i32
    %c0_i32_0 = arith.constant 0 : i32
    %c0_i32_1 = arith.constant 0 : i32
    return %c0_i32, %c0_i32_0 : i32, i32
  }
  func.func @transform_2(%arg0: i32) -> (i32, i32) {
    %c0_i32 = arith.constant 0 : i32
    %c0_i32_0 = arith.constant 0 : i32
    %c0_i32_1 = arith.constant 0 : i32
    return %c0_i32, %c0_i32_0 : i32, i32
  }
  func.func @transform_3(%arg0: i32) -> (i32, i32) {
    %c0_i32 = arith.constant 0 : i32
    %c0_i32_0 = arith.constant 0 : i32
    %c0_i32_1 = arith.constant 0 : i32
    return %c0_i32, %c0_i32_0 : i32, i32
  }
  func.func @transform_4(%arg0: i32) -> (i32, i32) {
    %c0_i32 = arith.constant 0 : i32
    %c0_i32_0 = arith.constant 0 : i32
    %c0_i32_1 = arith.constant 0 : i32
    return %c0_i32, %c0_i32_0 : i32, i32
  }
  func.func @transform_5(%arg0: i32) -> (i32, i32) {
    %c0_i32 = arith.constant 0 : i32
    %c0_i32_0 = arith.constant 0 : i32
    %c0_i32_1 = arith.constant 0 : i32
    return %c0_i32, %c0_i32_0 : i32, i32
  }
  func.func @transform_6(%arg0: i32) -> (i32, i32) {
    %c0_i32 = arith.constant 0 : i32
    %c0_i32_0 = arith.constant 0 : i32
    %c0_i32_1 = arith.constant 0 : i32
    return %c0_i32, %c0_i32_0 : i32, i32
  }
  func.func @transform_7(%arg0: i32) -> (i32, i32) {
    %c0_i32 = arith.constant 0 : i32
    %c0_i32_0 = arith.constant 0 : i32
    %c0_i32_1 = arith.constant 0 : i32
    return %c0_i32, %c0_i32_0 : i32, i32
  }
  func.func @transform_8(%arg0: i32) -> (i32, i32) {
    %c0_i32 = arith.constant 0 : i32
    %c0_i32_0 = arith.constant 0 : i32
    %c0_i32_1 = arith.constant 0 : i32
    return %c0_i32, %c0_i32_0 : i32, i32
  }
  func.func @transform_9(%arg0: i32) -> (i32, i32) {
    %c0_i32 = arith.constant 0 : i32
    %c0_i32_0 = arith.constant 0 : i32
    %c0_i32_1 = arith.constant 0 : i32
    return %c0_i32, %c0_i32_0 : i32, i32
  }
  func.func @transform_10(%arg0: i32) -> (i32, i32) {
    %c0_i32 = arith.constant 0 : i32
    %c0_i32_0 = arith.constant 0 : i32
    %c0_i32_1 = arith.constant 0 : i32
    return %c0_i32, %c0_i32_0 : i32, i32
  }
  func.func @transform_11(%arg0: i32) -> (i32, i32, i32) {
    %c0_i32 = arith.constant 0 : i32
    %c0_i32_0 = arith.constant 0 : i32
    %c0_i32_1 = arith.constant 0 : i32
    return %arg0, %c0_i32, %c0_i32_0 : i32, i32, i32
  }
  func.func @transform_12(%arg0: i32) -> (i32, i32, i32) {
    %c0_i32 = arith.constant 0 : i32
    %c0_i32_0 = arith.constant 0 : i32
    %c0_i32_1 = arith.constant 0 : i32
    return %arg0, %c0_i32, %c0_i32_0 : i32, i32, i32
  }
  func.func @transform_13(%arg0: i32) -> (i32, i32, i32) {
    %c0_i32 = arith.constant 0 : i32
    %c0_i32_0 = arith.constant 0 : i32
    %c0_i32_1 = arith.constant 0 : i32
    return %arg0, %c0_i32, %c0_i32_0 : i32, i32, i32
  }
}

</mosaic_0001>

<llo_original>
// kernel: cnn_categorical_actor_forward.1
$region0: #{cnn_categorical_actor_forward.1}
  #allocation0 [shape = 'u32[]', space=smem, size = 0x4, offset = 0x4, fixed_abs, tag = 'smem constant byte address 0x4 - core index']
  #allocation1 [shape = 'u32[144,128]{1,0:T(1,128)}', space=vmem, size = 0x12000, scoped, tag = 'internal scratch']
  %s0 = inlined_call_operand.vmem [shape: f32[2,2,8,64], index: 0, kind: input, shape index: {}]
  %s1 = inlined_call_operand.vmem [shape: f32[256,224], index: 1, kind: input, shape index: {}]
  %s2 = inlined_call_operand.vmem [shape: f32[1,224], index: 2, kind: input, shape index: {}]
  %s3 = inlined_call_operand.vmem [shape: f32[672,160], index: 3, kind: input, shape index: {}]
  %s4 = inlined_call_operand.vmem [shape: f32[1,160], index: 4, kind: input, shape index: {}]
  %s5 = inlined_call_operand.vmem [shape: f32[800,256], index: 5, kind: input, shape index: {}]
  %s6 = inlined_call_operand.vmem [shape: f32[1,256], index: 6, kind: input, shape index: {}]
  %s7 = inlined_call_operand.vmem [shape: f32[256,256], index: 7, kind: input, shape index: {}]
  %s8 = inlined_call_operand.vmem [shape: f32[1,256], index: 8, kind: input, shape index: {}]
  %s9 = inlined_call_operand.vmem [shape: f32[256,8], index: 9, kind: input, shape index: {}]
  %s10 = inlined_call_operand.vmem [shape: f32[1,8], index: 10, kind: input, shape index: {}]
  %s11 = inlined_call_operand.vmem [shape: s32[2,1,1], index: 11, kind: input, shape index: {}]
  %s12 = inlined_call_operand.hbm [shape: f32[2,1,8], index: 12, kind: output, shape index: {0}]
  %s13 = inlined_call_operand.vmem [shape: f32[2,1,1], index: 13, kind: output, shape index: {1}]
  %14 = xla_tuple %s12, %s13
  %s15 = sld [smem:[#allocation0]]
  $region89: #{cnn_categorical_actor_forward.1} parent=0
    _
  %s17 = ssub.s32 1, %s15
  %s18 = scalar_select 0, %s17, %s15
  $region1: #{cnn_categorical_actor_forward.1} parent=0
    #allocation2 [shape = 'u8[1024]{0}', space=vmem, size = 0x400, scoped, tag = 'output window, operand 0']
    #allocation3 [shape = 's32[2]{0}', space=sflag, size = 0x8, scoped, tag = 'scoped memory for cnn_categorical_actor_forward.1']
    %19 = vsyncpa [#allocation3], 0
    %s20 = scalar_lea.sflag [#allocation3], 1
    %21 = vsyncpa %s20, 0
    loop: start=0, step=1, limit=4
    $region2: #{cnn_categorical_actor_forward.1} parent=1 // loop_pre_header
      _
    $region3: #{cnn_categorical_actor_forward.1} parent=1 // loop_header
      %s23 = sphi 0, %s27
      %p24 = scmp.ge.s32.totalorder %s23, 4
      %s33 = sphi 0, %s35
      %s36 = sphi 0, %s33
      %s37 = sphi 0, %s36
      %s53 = sphi 0, %s37
      %s57 = sphi 0, %s57
      %s59 = sphi 0, %s57
      %s60 = sphi 0, %s59
      %s74 = sphi 0, %s60
      %s78 = sphi 0, %s78
      %s80 = sphi 0, %s78
      %s81 = sphi 0, %s80
      %s95 = sphi 0, %s81
      %s99 = sphi 0, %s99
      %s101 = sphi 0, %s99
      %s102 = sphi 0, %s101
      %s116 = sphi 0, %s102
      %s120 = sphi 0, %s120
      %s122 = sphi 0, %s120
      %s123 = sphi 0, %s122
      %s137 = sphi 0, %s123
      %s141 = sphi 0, %s141
      %s143 = sphi 0, %s141
      %s144 = sphi 0, %s143
      %s158 = sphi 0, %s144
      %s162 = sphi 0, %s162
      %s164 = sphi 0, %s162
      %s165 = sphi 0, %s164
      %s179 = sphi 0, %s165
      %s183 = sphi 0, %s183
      %s185 = sphi 0, %s183
      %s186 = sphi 0, %s185
      %s200 = sphi 0, %s186
      %s204 = sphi 0, %s204
      %s206 = sphi 0, %s204
      %s207 = sphi 0, %s206
      %s221 = sphi 0, %s207
      %s225 = sphi 0, %s225
      %s227 = sphi 0, %s225
      %s228 = sphi 0, %s227
      %s242 = sphi 0, %s228
      %s246 = sphi 0, %s246
      %s248 = sphi 0, %s246
      %s249 = sphi 0, %s248
      %s263 = sphi 0, %s249
      %s269 = sphi 0, %s271
      %s272 = sphi 0, %s269
      %s273 = sphi 0, %s272
      %s289 = sphi 0, %s273
      %s295 = sphi 0, %s297
      %s298 = sphi 0, %s295
      %s299 = sphi 0, %s298
      %s315 = sphi 0, %s299
      %s321 = sphi 0, %s323
      %s324 = sphi 0, %s321
      %s325 = sphi 0, %s324
      %s341 = sphi 0, %s325
    $region4: #{cnn_categorical_actor_forward.1} parent=1 // loop_header_branch
      %26 = sbr.rel (%p24) target = $region8
    $region5: #{cnn_categorical_actor_forward.1} parent=1 // loop_body
      %s28 = ssub.s32 %s23, 1
      %s29 = ssub.s32 %s23, 2
      %s30 = sadd.s32 %s23, 1
      %s31 = ssub.s32 %s23, %s30
      %p32 = scmp.eq.s32.totalorder %s31, 0
      %s34 = sadd.s32 %s33, 1
      %s35 = scalar_select %p32, %s33, %s34
      %p38 = pneg %p32
      %p39 = scmp.eq.s32.totalorder %s23, 1
      %p40 = por %p38, %p39
      %p41 = scmp.ne.s32.totalorder %s33, %s36
      %p42 = scmp.eq.s32.totalorder %s23, 0
      %p43 = por %p41, %p42
      %p44 = scmp.ne.s32.totalorder %s33, %s36
      %p45 = scmp.eq.s32.totalorder %s28, 1
      %p46 = por %p44, %p45
      %p47 = scmp.ne.s32.totalorder %s36, %s37
      %p48 = scmp.eq.s32.totalorder %s28, 0
      %p49 = por %p47, %p48
      %p50 = scmp.ne.s32.totalorder %s36, %s37
      %p51 = scmp.eq.s32.totalorder %s29, 1
      %p52 = por %p50, %p51
      %p54 = scmp.ne.s32.totalorder %s37, %s53
      %p55 = scmp.eq.s32.totalorder %s29, 0
      %p56 = por %p54, %p55
      %s58 = sadd.s32 %s57, 1
      %p61 = scmp.eq.s32.totalorder %s23, 1
      %p62 = scmp.ne.s32.totalorder %s57, %s59
      %p63 = scmp.eq.s32.totalorder %s23, 0
      %p64 = por %p62, %p63
      %p65 = scmp.ne.s32.totalorder %s57, %s59
      %p66 = scmp.eq.s32.totalorder %s28, 1
      %p67 = por %p65, %p66
      %p68 = scmp.ne.s32.totalorder %s59, %s60
      %p69 = scmp.eq.s32.totalorder %s28, 0
      %p70 = por %p68, %p69
      %p71 = scmp.ne.s32.totalorder %s59, %s60
      %p72 = scmp.eq.s32.totalorder %s29, 1
      %p73 = por %p71, %p72
      %p75 = scmp.ne.s32.totalorder %s60, %s74
      %p76 = scmp.eq.s32.totalorder %s29, 0
      %p77 = por %p75, %p76
      %s79 = sadd.s32 %s78, 1
      %p82 = scmp.eq.s32.totalorder %s23, 1
      %p83 = scmp.ne.s32.totalorder %s78, %s80
      %p84 = scmp.eq.s32.totalorder %s23, 0
      %p85 = por %p83, %p84
      %p86 = scmp.ne.s32.totalorder %s78, %s80
      %p87 = scmp.eq.s32.totalorder %s28, 1
      %p88 = por %p86, %p87
      %p89 = scmp.ne.s32.totalorder %s80, %s81
      %p90 = scmp.eq.s32.totalorder %s28, 0
      %p91 = por %p89, %p90
      %p92 = scmp.ne.s32.totalorder %s80, %s81
      %p93 = scmp.eq.s32.totalorder %s29, 1
      %p94 = por %p92, %p93
      %p96 = scmp.ne.s32.totalorder %s81, %s95
      %p97 = scmp.eq.s32.totalorder %s29, 0
      %p98 = por %p96, %p97
      %s100 = sadd.s32 %s99, 1
      %p103 = scmp.eq.s32.totalorder %s23, 1
      %p104 = scmp.ne.s32.totalorder %s99, %s101
      %p105 = scmp.eq.s32.totalorder %s23, 0
      %p106 = por %p104, %p105
      %p107 = scmp.ne.s32.totalorder %s99, %s101
      %p108 = scmp.eq.s32.totalorder %s28, 1
      %p109 = por %p107, %p108
      %p110 = scmp.ne.s32.totalorder %s101, %s102
      %p111 = scmp.eq.s32.totalorder %s28, 0
      %p112 = por %p110, %p111
      %p113 = scmp.ne.s32.totalorder %s101, %s102
      %p114 = scmp.eq.s32.totalorder %s29, 1
      %p115 = por %p113, %p114
      %p117 = scmp.ne.s32.totalorder %s102, %s116
      %p118 = scmp.eq.s32.totalorder %s29, 0
      %p119 = por %p117, %p118
      %s121 = sadd.s32 %s120, 1
      %p124 = scmp.eq.s32.totalorder %s23, 1
      %p125 = scmp.ne.s32.totalorder %s120, %s122
      %p126 = scmp.eq.s32.totalorder %s23, 0
      %p127 = por %p125, %p126
      %p128 = scmp.ne.s32.totalorder %s120, %s122
      %p129 = scmp.eq.s32.totalorder %s28, 1
      %p130 = por %p128, %p129
      %p131 = scmp.ne.s32.totalorder %s122, %s123
      %p132 = scmp.eq.s32.totalorder %s28, 0
      %p133 = por %p131, %p132
      %p134 = scmp.ne.s32.totalorder %s122, %s123
      %p135 = scmp.eq.s32.totalorder %s29, 1
      %p136 = por %p134, %p135
      %p138 = scmp.ne.s32.totalorder %s123, %s137
      %p139 = scmp.eq.s32.totalorder %s29, 0
      %p140 = por %p138, %p139
      %s142 = sadd.s32 %s141, 1
      %p145 = scmp.eq.s32.totalorder %s23, 1
      %p146 = scmp.ne.s32.totalorder %s141, %s143
      %p147 = scmp.eq.s32.totalorder %s23, 0
      %p148 = por %p146, %p147
      %p149 = scmp.ne.s32.totalorder %s141, %s143
      %p150 = scmp.eq.s32.totalorder %s28, 1
      %p151 = por %p149, %p150
      %p152 = scmp.ne.s32.totalorder %s143, %s144
      %p153 = scmp.eq.s32.totalorder %s28, 0
      %p154 = por %p152, %p153
      %p155 = scmp.ne.s32.totalorder %s143, %s144
      %p156 = scmp.eq.s32.totalorder %s29, 1
      %p157 = por %p155, %p156
      %p159 = scmp.ne.s32.totalorder %s144, %s158
      %p160 = scmp.eq.s32.totalorder %s29, 0
      %p161 = por %p159, %p160
      %s163 = sadd.s32 %s162, 1
      %p166 = scmp.eq.s32.totalorder %s23, 1
      %p167 = scmp.ne.s32.totalorder %s162, %s164
      %p168 = scmp.eq.s32.totalorder %s23, 0
      %p169 = por %p167, %p168
      %p170 = scmp.ne.s32.totalorder %s162, %s164
      %p171 = scmp.eq.s32.totalorder %s28, 1
      %p172 = por %p170, %p171
      %p173 = scmp.ne.s32.totalorder %s164, %s165
      %p174 = scmp.eq.s32.totalorder %s28, 0
      %p175 = por %p173, %p174
      %p176 = scmp.ne.s32.totalorder %s164, %s165
      %p177 = scmp.eq.s32.totalorder %s29, 1
      %p178 = por %p176, %p177
      %p180 = scmp.ne.s32.totalorder %s165, %s179
      %p181 = scmp.eq.s32.totalorder %s29, 0
      %p182 = por %p180, %p181
      %s184 = sadd.s32 %s183, 1
      %p187 = scmp.eq.s32.totalorder %s23, 1
      %p188 = scmp.ne.s32.totalorder %s183, %s185
      %p189 = scmp.eq.s32.totalorder %s23, 0
      %p190 = por %p188, %p189
      %p191 = scmp.ne.s32.totalorder %s183, %s185
      %p192 = scmp.eq.s32.totalorder %s28, 1
      %p193 = por %p191, %p192
      %p194 = scmp.ne.s32.totalorder %s185, %s186
      %p195 = scmp.eq.s32.totalorder %s28, 0
      %p196 = por %p194, %p195
      %p197 = scmp.ne.s32.totalorder %s185, %s186
      %p198 = scmp.eq.s32.totalorder %s29, 1
      %p199 = por %p197, %p198
      %p201 = scmp.ne.s32.totalorder %s186, %s200
      %p202 = scmp.eq.s32.totalorder %s29, 0
      %p203 = por %p201, %p202
      %s205 = sadd.s32 %s204, 1
      %p208 = scmp.eq.s32.totalorder %s23, 1
      %p209 = scmp.ne.s32.totalorder %s204, %s206
      %p210 = scmp.eq.s32.totalorder %s23, 0
      %p211 = por %p209, %p210
      %p212 = scmp.ne.s32.totalorder %s204, %s206
      %p213 = scmp.eq.s32.totalorder %s28, 1
      %p214 = por %p212, %p213
      %p215 = scmp.ne.s32.totalorder %s206, %s207
      %p216 = scmp.eq.s32.totalorder %s28, 0
      %p217 = por %p215, %p216
      %p218 = scmp.ne.s32.totalorder %s206, %s207
      %p219 = scmp.eq.s32.totalorder %s29, 1
      %p220 = por %p218, %p219
      %p222 = scmp.ne.s32.totalorder %s207, %s221
      %p223 = scmp.eq.s32.totalorder %s29, 0
      %p224 = por %p222, %p223
      %s226 = sadd.s32 %s225, 1
      %p229 = scmp.eq.s32.totalorder %s23, 1
      %p230 = scmp.ne.s32.totalorder %s225, %s227
      %p231 = scmp.eq.s32.totalorder %s23, 0
      %p232 = por %p230, %p231
      %p233 = scmp.ne.s32.totalorder %s225, %s227
      %p234 = scmp.eq.s32.totalorder %s28, 1
      %p235 = por %p233, %p234
      %p236 = scmp.ne.s32.totalorder %s227, %s228
      %p237 = scmp.eq.s32.totalorder %s28, 0
      %p238 = por %p236, %p237
      %p239 = scmp.ne.s32.totalorder %s227, %s228
      %p240 = scmp.eq.s32.totalorder %s29, 1
      %p241 = por %p239, %p240
      %p243 = scmp.ne.s32.totalorder %s228, %s242
      %p244 = scmp.eq.s32.totalorder %s29, 0
      %p245 = por %p243, %p244
      %s247 = sadd.s32 %s246, 1
      %p250 = scmp.eq.s32.totalorder %s23, 1
      %p251 = scmp.ne.s32.totalorder %s246, %s248
      %p252 = scmp.eq.s32.totalorder %s23, 0
      %p253 = por %p251, %p252
      %p254 = scmp.ne.s32.totalorder %s246, %s248
      %p255 = scmp.eq.s32.totalorder %s28, 1
      %p256 = por %p254, %p255
      %p257 = scmp.ne.s32.totalorder %s248, %s249
      %p258 = scmp.eq.s32.totalorder %s28, 0
      %p259 = por %p257, %p258
      %p260 = scmp.ne.s32.totalorder %s248, %s249
      %p261 = scmp.eq.s32.totalorder %s29, 1
      %p262 = por %p260, %p261
      %p264 = scmp.ne.s32.totalorder %s249, %s263
      %p265 = scmp.eq.s32.totalorder %s29, 0
      %p266 = por %p264, %p265
      %s267 = ssub.s32 %s23, %s30
      %p268 = scmp.eq.s32.totalorder %s267, 0
      %s270 = sadd.s32 %s269, 1
      %s271 = scalar_select %p268, %s269, %s270
      %p274 = pneg %p268
      %p275 = scmp.eq.s32.totalorder %s23, 1
      %p276 = por %p274, %p275
      %p277 = scmp.ne.s32.totalorder %s269, %s272
      %p278 = scmp.eq.s32.totalorder %s23, 0
      %p279 = por %p277, %p278
      %p280 = scmp.ne.s32.totalorder %s269, %s272
      %p281 = scmp.eq.s32.totalorder %s28, 1
      %p282 = por %p280, %p281
      %p283 = scmp.ne.s32.totalorder %s272, %s273
      %p284 = scmp.eq.s32.totalorder %s28, 0
      %p285 = por %p283, %p284
      %p286 = scmp.ne.s32.totalorder %s272, %s273
      %p287 = scmp.eq.s32.totalorder %s29, 1
      %p288 = por %p286, %p287
      %p290 = scmp.ne.s32.totalorder %s273, %s289
      %p291 = scmp.eq.s32.totalorder %s29, 0
      %p292 = por %p290, %p291
      %s293 = ssub.s32 %s23, %s30
      %p294 = scmp.eq.s32.totalorder %s293, 0
      %s296 = sadd.s32 %s295, 1
      %s297 = scalar_select %p294, %s295, %s296
      %p300 = pneg %p294
      %p301 = scmp.eq.s32.totalorder %s23, 1
      %p302 = por %p300, %p301
      %p303 = scmp.ne.s32.totalorder %s295, %s298
      %p304 = scmp.eq.s32.totalorder %s23, 0
      %p305 = por %p303, %p304
      %p306 = scmp.ne.s32.totalorder %s295, %s298
      %p307 = scmp.eq.s32.totalorder %s28, 1
      %p308 = por %p306, %p307
      %p309 = scmp.ne.s32.totalorder %s298, %s299
      %p310 = scmp.eq.s32.totalorder %s28, 0
      %p311 = por %p309, %p310
      %p312 = scmp.ne.s32.totalorder %s298, %s299
      %p313 = scmp.eq.s32.totalorder %s29, 1
      %p314 = por %p312, %p313
      %p316 = scmp.ne.s32.totalorder %s299, %s315
      %p317 = scmp.eq.s32.totalorder %s29, 0
      %p318 = por %p316, %p317
      %s319 = ssub.s32 %s23, %s30
      %p320 = scmp.eq.s32.totalorder %s319, 0
      %s322 = sadd.s32 %s321, 1
      %s323 = scalar_select %p320, %s321, %s322
      %p326 = pneg %p320
      %p327 = scmp.eq.s32.totalorder %s23, 1
      %p328 = por %p326, %p327
      %p329 = scmp.ne.s32.totalorder %s321, %s324
      %p330 = scmp.eq.s32.totalorder %s23, 0
      %p331 = por %p329, %p330
      %p332 = scmp.ne.s32.totalorder %s321, %s324
      %p333 = scmp.eq.s32.totalorder %s28, 1
      %p334 = por %p332, %p333
      %p335 = scmp.ne.s32.totalorder %s324, %s325
      %p336 = scmp.eq.s32.totalorder %s28, 0
      %p337 = por %p335, %p336
      %p338 = scmp.ne.s32.totalorder %s324, %s325
      %p339 = scmp.eq.s32.totalorder %s29, 1
      %p340 = por %p338, %p339
      %p342 = scmp.ne.s32.totalorder %s325, %s341
      %p343 = scmp.eq.s32.totalorder %s29, 0
      %p344 = por %p342, %p343
      %p345 = scmp.le.s32.totalorder 1, %s23
      %p346 = scmp.lt.s32.totalorder %s23, 3
      %p347 = pnand %p345, %p346
      %p348 = pneg %p347
      // Predicated region
      $region9: #{cnn_categorical_actor_forward.1} parent=5 // pred_check
        _
      $region10: #{cnn_categorical_actor_forward.1} parent=5 // pred_check_branch
        %350 = sbr.rel (%p347) target = $region12
      $region11: #{cnn_categorical_actor_forward.1} parent=5 // pred_region
        %s351 = ssub.s32 %s23, 1
        // Predicated region
        $region13: #{cnn_categorical_actor_forward.1} parent=11 // pred_check
          %p352 = pneg %p70
        $region14: #{cnn_categorical_actor_forward.1} parent=11 // pred_check_branch
          %354 = sbr.rel (%p352) target = $region16
        $region15: #{cnn_categorical_actor_forward.1} parent=11 // pred_region
          _
        $region16: #{cnn_categorical_actor_forward.1} parent=11 // pred_fallthru
          _
        // Predicated region
        $region17: #{cnn_categorical_actor_forward.1} parent=11 // pred_check
          %p355 = pneg %p91
        $region18: #{cnn_categorical_actor_forward.1} parent=11 // pred_check_branch
          %357 = sbr.rel (%p355) target = $region20
        $region19: #{cnn_categorical_actor_forward.1} parent=11 // pred_region
          _
        $region20: #{cnn_categorical_actor_forward.1} parent=11 // pred_fallthru
          _
        // Predicated region
        $region21: #{cnn_categorical_actor_forward.1} parent=11 // pred_check
          %p358 = pneg %p112
        $region22: #{cnn_categorical_actor_forward.1} parent=11 // pred_check_branch
          %360 = sbr.rel (%p358) target = $region24
        $region23: #{cnn_categorical_actor_forward.1} parent=11 // pred_region
          _
        $region24: #{cnn_categorical_actor_forward.1} parent=11 // pred_fallthru
          _
        // Predicated region
        $region25: #{cnn_categorical_actor_forward.1} parent=11 // pred_check
          %p361 = pneg %p133
        $region26: #{cnn_categorical_actor_forward.1} parent=11 // pred_check_branch
          %363 = sbr.rel (%p361) target = $region28
        $region27: #{cnn_categorical_actor_forward.1} parent=11 // pred_region
          _
        $region28: #{cnn_categorical_actor_forward.1} parent=11 // pred_fallthru
          _
        // Predicated region
        $region29: #{cnn_categorical_actor_forward.1} parent=11 // pred_check
          %p364 = pneg %p154
        $region30: #{cnn_categorical_actor_forward.1} parent=11 // pred_check_branch
          %366 = sbr.rel (%p364) target = $region32
        $region31: #{cnn_categorical_actor_forward.1} parent=11 // pred_region
          _
        $region32: #{cnn_categorical_actor_forward.1} parent=11 // pred_fallthru
          _
        // Predicated region
        $region33: #{cnn_categorical_actor_forward.1} parent=11 // pred_check
          %p367 = pneg %p175
        $region34: #{cnn_categorical_actor_forward.1} parent=11 // pred_check_branch
          %369 = sbr.rel (%p367) target = $region36
        $region35: #{cnn_categorical_actor_forward.1} parent=11 // pred_region
          _
        $region36: #{cnn_categorical_actor_forward.1} parent=11 // pred_fallthru
          _
        // Predicated region
        $region37: #{cnn_categorical_actor_forward.1} parent=11 // pred_check
          %p370 = pneg %p196
        $region38: #{cnn_categorical_actor_forward.1} parent=11 // pred_check_branch
          %372 = sbr.rel (%p370) target = $region40
        $region39: #{cnn_categorical_actor_forward.1} parent=11 // pred_region
          _
        $region40: #{cnn_categorical_actor_forward.1} parent=11 // pred_fallthru
          _
        // Predicated region
        $region41: #{cnn_categorical_actor_forward.1} parent=11 // pred_check
          %p373 = pneg %p217
        $region42: #{cnn_categorical_actor_forward.1} parent=11 // pred_check_branch
          %375 = sbr.rel (%p373) target = $region44
        $region43: #{cnn_categorical_actor_forward.1} parent=11 // pred_region
          _
        $region44: #{cnn_categorical_actor_forward.1} parent=11 // pred_fallthru
          _
        // Predicated region
        $region45: #{cnn_categorical_actor_forward.1} parent=11 // pred_check
          %p376 = pneg %p238
        $region46: #{cnn_categorical_actor_forward.1} parent=11 // pred_check_branch
          %378 = sbr.rel (%p376) target = $region48
        $region47: #{cnn_categorical_actor_forward.1} parent=11 // pred_region
          _
        $region48: #{cnn_categorical_actor_forward.1} parent=11 // pred_fallthru
          _
        // Predicated region
        $region49: #{cnn_categorical_actor_forward.1} parent=11 // pred_check
          %p379 = pneg %p259
        $region50: #{cnn_categorical_actor_forward.1} parent=11 // pred_check_branch
          %381 = sbr.rel (%p379) target = $region52
        $region51: #{cnn_categorical_actor_forward.1} parent=11 // pred_region
          _
        $region52: #{cnn_categorical_actor_forward.1} parent=11 // pred_fallthru
          _
      $region12: #{cnn_categorical_actor_forward.1} parent=5 // pred_fallthru
        _
      %p382 = scmp.lt.s32.totalorder %s23, 2
      // Predicated region
      $region53: #{cnn_categorical_actor_forward.1} parent=5 // pred_check
        %p383 = pneg %p382
      $region54: #{cnn_categorical_actor_forward.1} parent=5 // pred_check_branch
        %385 = sbr.rel (%p383) target = $region56
      $region55: #{cnn_categorical_actor_forward.1} parent=5 // pred_region
        // Predicated region
        $region57: #{cnn_categorical_actor_forward.1} parent=55 // pred_check
          %p386 = pneg %p43
        $region58: #{cnn_categorical_actor_forward.1} parent=55 // pred_check_branch
          %388 = sbr.rel (%p386) target = $region60
        $region59: #{cnn_categorical_actor_forward.1} parent=55 // pred_region
          %p389 = scmp.lt.s32.totalorder %s23, 1
          %s390 = scalar_select %p389, %s23, 1
          %s391 = smul.addr %s390, 2
          %s392 = smul.addr %s391, 8
          %s393 = scalar_lea.vmem %s0, %s392
        $region60: #{cnn_categorical_actor_forward.1} parent=55 // pred_fallthru
          _
        // Predicated region
        $region61: #{cnn_categorical_actor_forward.1} parent=55 // pred_check
          %p394 = pneg %p279
        $region62: #{cnn_categorical_actor_forward.1} parent=55 // pred_check_branch
          %396 = sbr.rel (%p394) target = $region64
        $region63: #{cnn_categorical_actor_forward.1} parent=55 // pred_region
          %p397 = scmp.lt.s32.totalorder %s23, 1
          %s398 = scalar_select %p397, %s23, 1
          %s399 = scalar_lea.vmem %s11, %s398
        $region64: #{cnn_categorical_actor_forward.1} parent=55 // pred_fallthru
          _
      $region56: #{cnn_categorical_actor_forward.1} parent=5 // pred_fallthru
        _
      %p400 = scmp.le.s32.totalorder 1, %s23
      %p401 = scmp.lt.s32.totalorder %s23, 3
      %p402 = pnand %p400, %p401
      %p403 = pneg %p402
      // Predicated region
      $region65: #{cnn_categorical_actor_forward.1} parent=5 // pred_check
        _
      $region66: #{cnn_categorical_actor_forward.1} parent=5 // pred_check_branch
        %405 = sbr.rel (%p402) target = $region68
      $region67: #{cnn_categorical_actor_forward.1} parent=5 // pred_region
        %s406 = ssub.s32 %s23, 1
        %p407 = scmp.lt.s32.totalorder %s28, 1
        %s408 = scalar_select %p407, %s28, 1
        %s409 = smul.addr %s408, 2
        %s410 = smul.addr %s409, 8
        %s411 = scalar_lea.vmem %s0, %s410
        %p412 = pneg %p49
        %p413 = pneg %p46
        %p414 = pneg %p70
        %p415 = pneg %p67
        %p416 = pneg %p91
        %p417 = pneg %p88
        %p418 = pneg %p112
        %p419 = pneg %p109
        %p420 = pneg %p133
        %p421 = pneg %p130
        %p422 = pneg %p154
        %p423 = pneg %p151
        %p424 = pneg %p175
        %p425 = pneg %p172
        %p426 = pneg %p196
        %p427 = pneg %p193
        %p428 = pneg %p217
        %p429 = pneg %p214
        %p430 = pneg %p238
        %p431 = pneg %p235
        %p432 = pneg %p259
        %p433 = pneg %p256
        %p434 = scmp.lt.s32.totalorder %s28, 1
        %s435 = scalar_select %p434, %s28, 1
        %s436 = scalar_lea.vmem %s11, %s435
        %p437 = pneg %p285
        %p438 = pneg %p282
        %p439 = pneg %p311
        %p440 = pneg %p308
        %s441 = sand.u32 %s298, 1
        %s442 = scalar_lea.sflag [#allocation3], %s441
        %s443 = sand.u32 %s298, 1
        %s444 = scalar_lea.vmem [#allocation2], %s443
        %p445 = pneg %p337
        %p446 = pneg %p334
        %p447 = scmp.lt.s32.totalorder %s28, 1
        %s448 = scalar_select %p447, %s28, 1
        %s449 = scalar_lea.vmem %s13, %s448
        %p450 = scmp.lt.s32.totalorder %s28, 1
        %s451 = scalar_select %p450, %s28, 1
        %s452 = smul.addr %s451, 2
        %s453 = smul.addr %s452, 8
        %s454 = scalar_lea.vmem %s0, %s453
        %p455 = scmp.lt.s32.totalorder %s28, 1
        %s456 = scalar_select %p455, %s28, 1
        %s457 = scalar_lea.vmem %s11, %s456
        %p458 = scmp.lt.s32.totalorder %s28, 1
        %s459 = scalar_select %p458, %s28, 1
        %s460 = scalar_lea.vmem %s13, %s459
        %v461 = vld [vmem:[%s454] sm:$0xff]
        %s462 = scalar_lea.vmem %s454, 8
        %v463 = vld [vmem:[%s462] sm:$0xff]
        %v464 = vld [vmem:[%s1] sm:$0xff]
        %v465 = vld [vmem:[%s1 + $0x8] sm:$0xff]
        %v466 = vld [vmem:[%s1 + $0x10] sm:$0xff]
        %v467 = vld [vmem:[%s1 + $0x18] sm:$0xff]
        %v468 = vld [vmem:[%s1 + $0x20] sm:$0xff]
        %v469 = vld [vmem:[%s1 + $0x28] sm:$0xff]
        %v470 = vld [vmem:[%s1 + $0x30] sm:$0xff]
        %v471 = vld [vmem:[%s1 + $0x38] sm:$0xff]
        %v472 = vld [vmem:[%s1 + $0x40] sm:$0xff]
        %v473 = vld [vmem:[%s1 + $0x48] sm:$0xff]
        %v474 = vld [vmem:[%s1 + $0x50] sm:$0xff]
        %v475 = vld [vmem:[%s1 + $0x58] sm:$0xff]
        %v476 = vld [vmem:[%s1 + $0x60] sm:$0xff]
        %v477 = vld [vmem:[%s1 + $0x68] sm:$0xff]
        %v478 = vld [vmem:[%s1 + $0x70] sm:$0xff]
        %v479 = vld [vmem:[%s1 + $0x78] sm:$0xff]
        %v480 = vld [vmem:[%s1 + $0x80] sm:$0xff]
        %v481 = vld [vmem:[%s1 + $0x88] sm:$0xff]
        %v482 = vld [vmem:[%s1 + $0x90] sm:$0xff]
        %v483 = vld [vmem:[%s1 + $0x98] sm:$0xff]
        %v484 = vld [vmem:[%s1 + $0xa0] sm:$0xff]
        %v485 = vld [vmem:[%s1 + $0xa8] sm:$0xff]
        %v486 = vld [vmem:[%s1 + $0xb0] sm:$0xff]
        %v487 = vld [vmem:[%s1 + $0xb8] sm:$0xff]
        %v488 = vld [vmem:[%s1 + $0xc0] sm:$0xff]
        %v489 = vld [vmem:[%s1 + $0xc8] sm:$0xff]
        %v490 = vld [vmem:[%s1 + $0xd0] sm:$0xff]
        %v491 = vld [vmem:[%s1 + $0xd8] sm:$0xff]
        %v492 = vld [vmem:[%s1 + $0xe0] sm:$0xff]
        %v493 = vld [vmem:[%s1 + $0xe8] sm:$0xff]
        %v494 = vld [vmem:[%s1 + $0xf0] sm:$0xff]
        %v495 = vld [vmem:[%s1 + $0xf8] sm:$0xff]
        %vm496 = vcmask 523264
        %v498 = vsel %vm496, %v463, 0
        %500 = vmatprep.subr.mxu0 %v481
        %501 = vmatpush1.msra.mxu0 %v480
        %502 = vmatprep.subr.mxu0 %v483
        %503 = vmatpush1.msra.mxu0 %v482
        %504 = vmatprep.subr.mxu0 %v485
        %505 = vmatpush1.msra.mxu0 %v484
        %506 = vmatprep.subr.mxu0 %v487
        %507 = vmatpush1.msra.mxu0 %v486
        %508 = vmatprep.subr.mxu0 %v489
        %509 = vmatpush1.msra.mxu0 %v488
        %510 = vmatprep.subr.mxu0 %v491
        %511 = vmatpush1.msra.mxu0 %v490
        %512 = vmatprep.subr.mxu0 %v493
        %513 = vmatpush1.msra.mxu0 %v492
        %514 = vmatprep.subr.mxu0 %v495
        %515 = vmatpush1.msra.mxu0 %v494
        %516 = vmatprep.subr.mxu0 0.0
        %517 = vmatpush1.msra.mxu0 0.0
        %518 = vmatprep.subr.mxu0 0.0
        %519 = vmatpush1.msra.mxu0 0.0
        %520 = vmatprep.subr.mxu0 0.0
        %521 = vmatpush1.msra.mxu0 0.0
        %522 = vmatprep.subr.mxu0 0.0
        %523 = vmatpush1.msra.mxu0 0.0
        %524 = vmatprep.subr.mxu0 0.0
        %525 = vmatpush1.msra.mxu0 0.0
        %526 = vmatprep.subr.mxu0 0.0
        %527 = vmatpush1.msra.mxu0 0.0
        %528 = vmatprep.subr.mxu0 0.0
        %529 = vmatpush1.msra.mxu0 0.0
        %530 = vmatprep.subr.mxu0 0.0
        %531 = vmatpush1.msra.mxu0 0.0
        %532 = vmatprep.subr.mxu0 0.0
        %533 = vmatpush1.msra.mxu0 0.0
        %534 = vmatprep.subr.mxu0 0.0
        %535 = vmatpush1.msra.mxu0 0.0
        %536 = vmatprep.subr.mxu0 0.0
        %537 = vmatpush1.msra.mxu0 0.0
        %538 = vmatprep.subr.mxu0 0.0
        %539 = vmatpush1.msra.mxu0 0.0
        %540 = vmatprep.subr.mxu0 0.0
        %541 = vmatpush1.msra.mxu0 0.0
        %542 = vmatprep.subr.mxu0 0.0
        %543 = vmatpush1.msra.mxu0 0.0
        %544 = vmatprep.subr.mxu0 0.0
        %545 = vmatpush1.msra.mxu0 0.0
        %546 = vmatprep.subr.mxu0 0.0
        %547 = vmatpush1.msra.mxu0 0.0
        %548 = vmatprep.subr.mxu0 0.0
        %549 = vmatpush1.msra.mxu0 0.0
        %550 = vmatprep.subr.mxu0 0.0
        %551 = vmatpush1.msra.mxu0 0.0
        %552 = vmatprep.subr.mxu0 0.0
        %553 = vmatpush1.msra.mxu0 0.0
        %554 = vmatprep.subr.mxu0 0.0
        %555 = vmatpush1.msra.mxu0 0.0
        %556 = vmatprep.subr.mxu0 0.0
        %557 = vmatpush1.msra.mxu0 0.0
        %558 = vmatprep.subr.mxu0 0.0
        %559 = vmatpush1.msra.mxu0 0.0
        %560 = vmatprep.subr.mxu0 0.0
        %561 = vmatpush1.msra.mxu0 0.0
        %562 = vmatprep.subr.mxu0 0.0
        %563 = vmatpush1.msra.mxu0 0.0
        %564 = vmatprep.mubr.f32.mxu0 0.0
        %565 = vmatmul.mubr.f32.gmra.mrb[0].mxu0 %v498
        %v566 = vpop.f32.mrb[0].mxu0
        %v567 = vadd.f32 0.0, %v566
        %v568 = vpop.f32.mrb[0].mxu0
        %v569 = vadd.f32 0.0, %v568
        %570 = vdwg.mxu0
        %v572 = vsel %vm496, %v461, 0
        %574 = vmatprep.subr.mxu0 %v465
        %575 = vmatpush1.msra.mxu0 %v464
        %576 = vmatprep.subr.mxu0 %v467
        %577 = vmatpush1.msra.mxu0 %v466
        %578 = vmatprep.subr.mxu0 %v469
        %579 = vmatpush1.msra.mxu0 %v468
        %580 = vmatprep.subr.mxu0 %v471
        %581 = vmatpush1.msra.mxu0 %v470
        %582 = vmatprep.subr.mxu0 %v473
        %583 = vmatpush1.msra.mxu0 %v472
        %584 = vmatprep.subr.mxu0 %v475
        %585 = vmatpush1.msra.mxu0 %v474
        %586 = vmatprep.subr.mxu0 %v477
        %587 = vmatpush1.msra.mxu0 %v476
        %588 = vmatprep.subr.mxu0 %v479
        %589 = vmatpush1.msra.mxu0 %v478
        %590 = vmatprep.subr.mxu0 0.0
        %591 = vmatpush1.msra.mxu0 0.0
        %592 = vmatprep.subr.mxu0 0.0
        %593 = vmatpush1.msra.mxu0 0.0
        %594 = vmatprep.subr.mxu0 0.0
        %595 = vmatpush1.msra.mxu0 0.0
        %596 = vmatprep.subr.mxu0 0.0
        %597 = vmatpush1.msra.mxu0 0.0
        %598 = vmatprep.subr.mxu0 0.0
        %599 = vmatpush1.msra.mxu0 0.0
        %600 = vmatprep.subr.mxu0 0.0
        %601 = vmatpush1.msra.mxu0 0.0
        %602 = vmatprep.subr.mxu0 0.0
        %603 = vmatpush1.msra.mxu0 0.0
        %604 = vmatprep.subr.mxu0 0.0
        %605 = vmatpush1.msra.mxu0 0.0
        %606 = vmatprep.subr.mxu0 0.0
        %607 = vmatpush1.msra.mxu0 0.0
        %608 = vmatprep.subr.mxu0 0.0
        %609 = vmatpush1.msra.mxu0 0.0
        %610 = vmatprep.subr.mxu0 0.0
        %611 = vmatpush1.msra.mxu0 0.0
        %612 = vmatprep.subr.mxu0 0.0
        %613 = vmatpush1.msra.mxu0 0.0
        %614 = vmatprep.subr.mxu0 0.0
        %615 = vmatpush1.msra.mxu0 0.0
        %616 = vmatprep.subr.mxu0 0.0
        %617 = vmatpush1.msra.mxu0 0.0
        %618 = vmatprep.subr.mxu0 0.0
        %619 = vmatpush1.msra.mxu0 0.0
        %620 = vmatprep.subr.mxu0 0.0
        %621 = vmatpush1.msra.mxu0 0.0
        %622 = vmatprep.subr.mxu0 0.0
        %623 = vmatpush1.msra.mxu0 0.0
        %624 = vmatprep.subr.mxu0 0.0
        %625 = vmatpush1.msra.mxu0 0.0
        %626 = vmatprep.subr.mxu0 0.0
        %627 = vmatpush1.msra.mxu0 0.0
        %628 = vmatprep.subr.mxu0 0.0
        %629 = vmatpush1.msra.mxu0 0.0
        %630 = vmatprep.subr.mxu0 0.0
        %631 = vmatpush1.msra.mxu0 0.0
        %632 = vmatprep.subr.mxu0 0.0
        %633 = vmatpush1.msra.mxu0 0.0
        %634 = vmatprep.subr.mxu0 0.0
        %635 = vmatpush1.msra.mxu0 0.0
        %636 = vmatprep.subr.mxu0 0.0
        %637 = vmatpush1.msra.mxu0 0.0
        %638 = vmatprep.mubr.f32.mxu0 0.0
        %639 = vmatmul.mubr.f32.gmra.mrb[0].mxu0 %v572
        %v640 = vpop.f32.mrb[0].mxu0
        %v641 = vadd.f32 %v567, %v640
        %v642 = vpop.f32.mrb[0].mxu0
        %v643 = vadd.f32 %v569, %v642
        %644 = vdwg.mxu0
        %v645 = vld [vmem:[%s1 + $0x100] sm:$0xff]
        %v646 = vld [vmem:[%s1 + $0x108] sm:$0xff]
        %v647 = vld [vmem:[%s1 + $0x110] sm:$0xff]
        %v648 = vld [vmem:[%s1 + $0x118] sm:$0xff]
        %v649 = vld [vmem:[%s1 + $0x120] sm:$0xff]
        %v650 = vld [vmem:[%s1 + $0x128] sm:$0xff]
        %v651 = vld [vmem:[%s1 + $0x130] sm:$0xff]
        %v652 = vld [vmem:[%s1 + $0x138] sm:$0xff]
        %v653 = vld [vmem:[%s1 + $0x140] sm:$0xff]
        %v654 = vld [vmem:[%s1 + $0x148] sm:$0xff]
        %v655 = vld [vmem:[%s1 + $0x150] sm:$0xff]
        %v656 = vld [vmem:[%s1 + $0x158] sm:$0xff]
        %v657 = vld [vmem:[%s1 + $0x160] sm:$0xff]
        %v658 = vld [vmem:[%s1 + $0x168] sm:$0xff]
        %v659 = vld [vmem:[%s1 + $0x170] sm:$0xff]
        %v660 = vld [vmem:[%s1 + $0x178] sm:$0xff]
        %v661 = vrot.slane %v461, 1
        %v662 = vsel %vm496, %v661, 0
        %664 = vmatprep.subr.mxu0 %v646
        %665 = vmatpush1.msra.mxu0 %v645
        %666 = vmatprep.subr.mxu0 %v648
        %667 = vmatpush1.msra.mxu0 %v647
        %668 = vmatprep.subr.mxu0 %v650
        %669 = vmatpush1.msra.mxu0 %v649
        %670 = vmatprep.subr.mxu0 %v652
        %671 = vmatpush1.msra.mxu0 %v651
        %672 = vmatprep.subr.mxu0 %v654
        %673 = vmatpush1.msra.mxu0 %v653
        %674 = vmatprep.subr.mxu0 %v656
        %675 = vmatpush1.msra.mxu0 %v655
        %676 = vmatprep.subr.mxu0 %v658
        %677 = vmatpush1.msra.mxu0 %v657
        %678 = vmatprep.subr.mxu0 %v660
        %679 = vmatpush1.msra.mxu0 %v659
        %680 = vmatprep.subr.mxu0 0.0
        %681 = vmatpush1.msra.mxu0 0.0
        %682 = vmatprep.subr.mxu0 0.0
        %683 = vmatpush1.msra.mxu0 0.0
        %684 = vmatprep.subr.mxu0 0.0
        %685 = vmatpush1.msra.mxu0 0.0
        %686 = vmatprep.subr.mxu0 0.0
        %687 = vmatpush1.msra.mxu0 0.0
        %688 = vmatprep.subr.mxu0 0.0
        %689 = vmatpush1.msra.mxu0 0.0
        %690 = vmatprep.subr.mxu0 0.0
        %691 = vmatpush1.msra.mxu0 0.0
        %692 = vmatprep.subr.mxu0 0.0
        %693 = vmatpush1.msra.mxu0 0.0
        %694 = vmatprep.subr.mxu0 0.0
        %695 = vmatpush1.msra.mxu0 0.0
        %696 = vmatprep.subr.mxu0 0.0
        %697 = vmatpush1.msra.mxu0 0.0
        %698 = vmatprep.subr.mxu0 0.0
        %699 = vmatpush1.msra.mxu0 0.0
        %700 = vmatprep.subr.mxu0 0.0
        %701 = vmatpush1.msra.mxu0 0.0
        %702 = vmatprep.subr.mxu0 0.0
        %703 = vmatpush1.msra.mxu0 0.0
        %704 = vmatprep.subr.mxu0 0.0
        %705 = vmatpush1.msra.mxu0 0.0
        %706 = vmatprep.subr.mxu0 0.0
        %707 = vmatpush1.msra.mxu0 0.0
        %708 = vmatprep.subr.mxu0 0.0
        %709 = vmatpush1.msra.mxu0 0.0
        %710 = vmatprep.subr.mxu0 0.0
        %711 = vmatpush1.msra.mxu0 0.0
        %712 = vmatprep.subr.mxu0 0.0
        %713 = vmatpush1.msra.mxu0 0.0
        %714 = vmatprep.subr.mxu0 0.0
        %715 = vmatpush1.msra.mxu0 0.0
        %716 = vmatprep.subr.mxu0 0.0
        %717 = vmatpush1.msra.mxu0 0.0
        %718 = vmatprep.subr.mxu0 0.0
        %719 = vmatpush1.msra.mxu0 0.0
        %720 = vmatprep.subr.mxu0 0.0
        %721 = vmatpush1.msra.mxu0 0.0
        %722 = vmatprep.subr.mxu0 0.0
        %723 = vmatpush1.msra.mxu0 0.0
        %724 = vmatprep.subr.mxu0 0.0
        %725 = vmatpush1.msra.mxu0 0.0
        %726 = vmatprep.subr.mxu0 0.0
        %727 = vmatpush1.msra.mxu0 0.0
        %728 = vmatprep.mubr.f32.mxu0 0.0
        %729 = vmatmul.mubr.f32.gmra.mrb[0].mxu0 %v662
        %v730 = vpop.f32.mrb[0].mxu0
        %v731 = vadd.f32 0.0, %v730
        %v732 = vpop.f32.mrb[0].mxu0
        %v733 = vadd.f32 0.0, %v732
        %734 = vdwg.mxu0
        %v735 = vadd.f32 %v641, %v731
        %v736 = vadd.f32 %v643, %v733
        %v737 = vld [vmem:[%s1 + $0x180] sm:$0xff]
        %v738 = vld [vmem:[%s1 + $0x188] sm:$0xff]
        %v739 = vld [vmem:[%s1 + $0x190] sm:$0xff]
        %v740 = vld [vmem:[%s1 + $0x198] sm:$0xff]
        %v741 = vld [vmem:[%s1 + $0x1a0] sm:$0xff]
        %v742 = vld [vmem:[%s1 + $0x1a8] sm:$0xff]
        %v743 = vld [vmem:[%s1 + $0x1b0] sm:$0xff]
        %v744 = vld [vmem:[%s1 + $0x1b8] sm:$0xff]
        %v745 = vld [vmem:[%s1 + $0x1c0] sm:$0xff]
        %v746 = vld [vmem:[%s1 + $0x1c8] sm:$0xff]
        %v747 = vld [vmem:[%s1 + $0x1d0] sm:$0xff]
        %v748 = vld [vmem:[%s1 + $0x1d8] sm:$0xff]
        %v749 = vld [vmem:[%s1 + $0x1e0] sm:$0xff]
        %v750 = vld [vmem:[%s1 + $0x1e8] sm:$0xff]
        %v751 = vld [vmem:[%s1 + $0x1f0] sm:$0xff]
        %v752 = vld [vmem:[%s1 + $0x1f8] sm:$0xff]
        %v753 = vrot.slane %v463, 1
        %v754 = vsel %vm496, %v753, 0
        %756 = vmatprep.subr.mxu0 %v738
        %757 = vmatpush1.msra.mxu0 %v737
        %758 = vmatprep.subr.mxu0 %v740
        %759 = vmatpush1.msra.mxu0 %v739
        %760 = vmatprep.subr.mxu0 %v742
        %761 = vmatpush1.msra.mxu0 %v741
        %762 = vmatprep.subr.mxu0 %v744
        %763 = vmatpush1.msra.mxu0 %v743
        %764 = vmatprep.subr.mxu0 %v746
        %765 = vmatpush1.msra.mxu0 %v745
        %766 = vmatprep.subr.mxu0 %v748
        %767 = vmatpush1.msra.mxu0 %v747
        %768 = vmatprep.subr.mxu0 %v750
        %769 = vmatpush1.msra.mxu0 %v749
        %770 = vmatprep.subr.mxu0 %v752
        %771 = vmatpush1.msra.mxu0 %v751
        %772 = vmatprep.subr.mxu0 0.0
        %773 = vmatpush1.msra.mxu0 0.0
        %774 = vmatprep.subr.mxu0 0.0
        %775 = vmatpush1.msra.mxu0 0.0
        %776 = vmatprep.subr.mxu0 0.0
        %777 = vmatpush1.msra.mxu0 0.0
        %778 = vmatprep.subr.mxu0 0.0
        %779 = vmatpush1.msra.mxu0 0.0
        %780 = vmatprep.subr.mxu0 0.0
        %781 = vmatpush1.msra.mxu0 0.0
        %782 = vmatprep.subr.mxu0 0.0
        %783 = vmatpush1.msra.mxu0 0.0
        %784 = vmatprep.subr.mxu0 0.0
        %785 = vmatpush1.msra.mxu0 0.0
        %786 = vmatprep.subr.mxu0 0.0
        %787 = vmatpush1.msra.mxu0 0.0
        %788 = vmatprep.subr.mxu0 0.0
        %789 = vmatpush1.msra.mxu0 0.0
        %790 = vmatprep.subr.mxu0 0.0
        %791 = vmatpush1.msra.mxu0 0.0
        %792 = vmatprep.subr.mxu0 0.0
        %793 = vmatpush1.msra.mxu0 0.0
        %794 = vmatprep.subr.mxu0 0.0
        %795 = vmatpush1.msra.mxu0 0.0
        %796 = vmatprep.subr.mxu0 0.0
        %797 = vmatpush1.msra.mxu0 0.0
        %798 = vmatprep.subr.mxu0 0.0
        %799 = vmatpush1.msra.mxu0 0.0
        %800 = vmatprep.subr.mxu0 0.0
        %801 = vmatpush1.msra.mxu0 0.0
        %802 = vmatprep.subr.mxu0 0.0
        %803 = vmatpush1.msra.mxu0 0.0
        %804 = vmatprep.subr.mxu0 0.0
        %805 = vmatpush1.msra.mxu0 0.0
        %806 = vmatprep.subr.mxu0 0.0
        %807 = vmatpush1.msra.mxu0 0.0
        %808 = vmatprep.subr.mxu0 0.0
        %809 = vmatpush1.msra.mxu0 0.0
        %810 = vmatprep.subr.mxu0 0.0
        %811 = vmatpush1.msra.mxu0 0.0
        %812 = vmatprep.subr.mxu0 0.0
        %813 = vmatpush1.msra.mxu0 0.0
        %814 = vmatprep.subr.mxu0 0.0
        %815 = vmatpush1.msra.mxu0 0.0
        %816 = vmatprep.subr.mxu0 0.0
        %817 = vmatpush1.msra.mxu0 0.0
        %818 = vmatprep.subr.mxu0 0.0
        %819 = vmatpush1.msra.mxu0 0.0
        %820 = vmatprep.mubr.f32.mxu0 0.0
        %821 = vmatmul.mubr.f32.gmra.mrb[0].mxu0 %v754
        %v822 = vpop.f32.mrb[0].mxu0
        %v823 = vadd.f32 0.0, %v822
        %v824 = vpop.f32.mrb[0].mxu0
        %v825 = vadd.f32 0.0, %v824
        %826 = vdwg.mxu0
        %v827 = vadd.f32 %v735, %v823
        %v828 = vadd.f32 %v736, %v825
        %v829 = vld [vmem:[%s2] sm:$0x3]
        %v831 = vlaneseq
        %v832 = vshrl.u32 %v831, 7
        %v833 = vsub.s32 0, %v832
        %v834 = vrot.slane %v829, %v833
        %v835 = vlaneseq
        %v836 = vshrl.u32 %v835, 7
        %v837 = vsub.s32 1, %v836
        %v838 = vrot.slane %v829, %v837
        %v841 = vadd.f32 %v827, %v834
        %v842 = vadd.f32 %v828, %v838
        %v843 = vld [vmem:[%s3] sm:$0xff]
        %v844 = vld [vmem:[%s3 + $0x8] sm:$0xff]
        %v845 = vld [vmem:[%s3 + $0x10] sm:$0xff]
        %v846 = vld [vmem:[%s3 + $0x18] sm:$0xff]
        %v847 = vld [vmem:[%s3 + $0x20] sm:$0xff]
        %v848 = vld [vmem:[%s3 + $0x28] sm:$0xff]
        %v849 = vld [vmem:[%s3 + $0x30] sm:$0xff]
        %v850 = vld [vmem:[%s3 + $0x38] sm:$0xff]
        %v851 = vld [vmem:[%s3 + $0x40] sm:$0xff]
        %v852 = vld [vmem:[%s3 + $0x48] sm:$0xff]
        %v853 = vld [vmem:[%s3 + $0x50] sm:$0xff]
        %v854 = vld [vmem:[%s3 + $0x58] sm:$0xff]
        %v855 = vld [vmem:[%s3 + $0x60] sm:$0xff]
        %v856 = vld [vmem:[%s3 + $0x68] sm:$0xff]
        %v857 = vld [vmem:[%s3 + $0x70] sm:$0xff]
        %v858 = vld [vmem:[%s3 + $0x78] sm:$0xff]
        %v859 = vld [vmem:[%s3 + $0x80] sm:$0xff]
        %v860 = vld [vmem:[%s3 + $0x88] sm:$0xff]
        %v861 = vld [vmem:[%s3 + $0x90] sm:$0xff]
        %v862 = vld [vmem:[%s3 + $0x98] sm:$0xff]
        %v863 = vld [vmem:[%s3 + $0xa0] sm:$0xff]
        %v864 = vld [vmem:[%s3 + $0xa8] sm:$0xff]
        %v865 = vld [vmem:[%s3 + $0xb0] sm:$0xff]
        %v866 = vld [vmem:[%s3 + $0xb8] sm:$0xff]
        %v867 = vld [vmem:[%s3 + $0xc0] sm:$0xff]
        %v868 = vld [vmem:[%s3 + $0xc8] sm:$0xff]
        %v869 = vld [vmem:[%s3 + $0xd0] sm:$0xff]
        %v870 = vld [vmem:[%s3 + $0xd8] sm:$0xff]
        %v871 = vld [vmem:[%s3 + $0xe0] sm:$0xff]
        %v872 = vld [vmem:[%s3 + $0xe8] sm:$0xff]
        %v873 = vld [vmem:[%s3 + $0xf0] sm:$0xff]
        %v874 = vld [vmem:[%s3 + $0xf8] sm:$0xff]
        %v875 = vld [vmem:[%s3 + $0x100] sm:$0xff]
        %v876 = vld [vmem:[%s3 + $0x108] sm:$0xff]
        %v877 = vld [vmem:[%s3 + $0x110] sm:$0xff]
        %v878 = vld [vmem:[%s3 + $0x118] sm:$0xff]
        %v879 = vld [vmem:[%s3 + $0x120] sm:$0xff]
        %v880 = vld [vmem:[%s3 + $0x128] sm:$0xff]
        %v881 = vld [vmem:[%s3 + $0x130] sm:$0xff]
        %v882 = vld [vmem:[%s3 + $0x138] sm:$0xff]
        %v883 = vld [vmem:[%s3 + $0x140] sm:$0xff]
        %v884 = vld [vmem:[%s3 + $0x148] sm:$0xff]
        %v885 = vld [vmem:[%s3 + $0x150] sm:$0xff]
        %v886 = vld [vmem:[%s3 + $0x158] sm:$0xff]
        %v887 = vld [vmem:[%s3 + $0x160] sm:$0xff]
        %v888 = vld [vmem:[%s3 + $0x168] sm:$0xff]
        %v889 = vld [vmem:[%s3 + $0x170] sm:$0xff]
        %v890 = vld [vmem:[%s3 + $0x178] sm:$0xff]
        %v891 = vld [vmem:[%s3 + $0x180] sm:$0xff]
        %v892 = vld [vmem:[%s3 + $0x188] sm:$0xff]
        %v893 = vld [vmem:[%s3 + $0x190] sm:$0xff]
        %v894 = vld [vmem:[%s3 + $0x198] sm:$0xff]
        %v895 = vld [vmem:[%s3 + $0x1a0] sm:$0xff]
        %v896 = vld [vmem:[%s3 + $0x1a8] sm:$0xff]
        %v897 = vld [vmem:[%s3 + $0x1b0] sm:$0xff]
        %v898 = vld [vmem:[%s3 + $0x1b8] sm:$0xff]
        %v899 = vld [vmem:[%s3 + $0x1c0] sm:$0xff]
        %v900 = vld [vmem:[%s3 + $0x1c8] sm:$0xff]
        %v901 = vld [vmem:[%s3 + $0x1d0] sm:$0xff]
        %v902 = vld [vmem:[%s3 + $0x1d8] sm:$0xff]
        %v903 = vld [vmem:[%s3 + $0x1e0] sm:$0xff]
        %v904 = vld [vmem:[%s3 + $0x1e8] sm:$0xff]
        %v905 = vld [vmem:[%s3 + $0x1f0] sm:$0xff]
        %v906 = vld [vmem:[%s3 + $0x1f8] sm:$0xff]
        %v907 = vld [vmem:[%s3 + $0x200] sm:$0xff]
        %v908 = vld [vmem:[%s3 + $0x208] sm:$0xff]
        %v909 = vld [vmem:[%s3 + $0x210] sm:$0xff]
        %v910 = vld [vmem:[%s3 + $0x218] sm:$0xff]
        %v911 = vld [vmem:[%s3 + $0x220] sm:$0xff]
        %v912 = vld [vmem:[%s3 + $0x228] sm:$0xff]
        %v913 = vld [vmem:[%s3 + $0x230] sm:$0xff]
        %v914 = vld [vmem:[%s3 + $0x238] sm:$0xff]
        %v915 = vld [vmem:[%s3 + $0x240] sm:$0xff]
        %v916 = vld [vmem:[%s3 + $0x248] sm:$0xff]
        %v917 = vld [vmem:[%s3 + $0x250] sm:$0xff]
        %v918 = vld [vmem:[%s3 + $0x258] sm:$0xff]
        %v919 = vld [vmem:[%s3 + $0x260] sm:$0xff]
        %v920 = vld [vmem:[%s3 + $0x268] sm:$0xff]
        %v921 = vld [vmem:[%s3 + $0x270] sm:$0xff]
        %v922 = vld [vmem:[%s3 + $0x278] sm:$0xff]
        %v923 = vld [vmem:[%s3 + $0x280] sm:$0xff]
        %v924 = vld [vmem:[%s3 + $0x288] sm:$0xff]
        %v925 = vld [vmem:[%s3 + $0x290] sm:$0xff]
        %v926 = vld [vmem:[%s3 + $0x298] sm:$0xff]
        %v927 = vld [vmem:[%s3 + $0x2a0] sm:$0xff]
        %v928 = vld [vmem:[%s3 + $0x2a8] sm:$0xff]
        %v929 = vld [vmem:[%s3 + $0x2b0] sm:$0xff]
        %v930 = vld [vmem:[%s3 + $0x2b8] sm:$0xff]
        %v931 = vld [vmem:[%s3 + $0x2c0] sm:$0xff]
        %v932 = vld [vmem:[%s3 + $0x2c8] sm:$0xff]
        %v933 = vld [vmem:[%s3 + $0x2d0] sm:$0xff]
        %v934 = vld [vmem:[%s3 + $0x2d8] sm:$0xff]
        %v935 = vld [vmem:[%s3 + $0x2e0] sm:$0xff]
        %v936 = vld [vmem:[%s3 + $0x2e8] sm:$0xff]
        %v937 = vld [vmem:[%s3 + $0x2f0] sm:$0xff]
        %v938 = vld [vmem:[%s3 + $0x2f8] sm:$0xff]
        %v939 = vld [vmem:[%s3 + $0x300] sm:$0xff]
        %v940 = vld [vmem:[%s3 + $0x308] sm:$0xff]
        %v941 = vld [vmem:[%s3 + $0x310] sm:$0xff]
        %v942 = vld [vmem:[%s3 + $0x318] sm:$0xff]
        %v943 = vld [vmem:[%s3 + $0x320] sm:$0xff]
        %v944 = vld [vmem:[%s3 + $0x328] sm:$0xff]
        %v945 = vld [vmem:[%s3 + $0x330] sm:$0xff]
        %v946 = vld [vmem:[%s3 + $0x338] sm:$0xff]
        %v947 = vld [vmem:[%s3 + $0x340] sm:$0xff]
        %v948 = vld [vmem:[%s3 + $0x348] sm:$0xff]
        %v949 = vld [vmem:[%s3 + $0x350] sm:$0xff]
        %v950 = vld [vmem:[%s3 + $0x358] sm:$0xff]
        %v951 = vld [vmem:[%s3 + $0x360] sm:$0xff]
        %v952 = vld [vmem:[%s3 + $0x368] sm:$0xff]
        %v953 = vld [vmem:[%s3 + $0x370] sm:$0xff]
        %v954 = vld [vmem:[%s3 + $0x378] sm:$0xff]
        %v957 = vrot.slane %v841, 1
        %v958 = vrot.slane %v842, 1
        %vm960 = vcmask 785408
        %v961 = vsel %vm960, %v958, 0
        %963 = vmatprep.subr.mxu0 %v900
        %964 = vmatpush1.msra.mxu0 %v899
        %965 = vmatprep.subr.mxu0 %v902
        %966 = vmatpush1.msra.mxu0 %v901
        %967 = vmatprep.subr.mxu0 %v904
        %968 = vmatpush1.msra.mxu0 %v903
        %969 = vmatprep.subr.mxu0 %v906
        %970 = vmatpush1.msra.mxu0 %v905
        %971 = vmatprep.subr.mxu0 %v908
        %972 = vmatpush1.msra.mxu0 %v907
        %973 = vmatprep.subr.mxu0 %v910
        %974 = vmatpush1.msra.mxu0 %v909
        %975 = vmatprep.subr.mxu0 %v912
        %976 = vmatpush1.msra.mxu0 %v911
        %977 = vmatprep.subr.mxu0 %v914
        %978 = vmatpush1.msra.mxu0 %v913
        %979 = vmatprep.subr.mxu0 %v916
        %980 = vmatpush1.msra.mxu0 %v915
        %981 = vmatprep.subr.mxu0 %v918
        %982 = vmatpush1.msra.mxu0 %v917
        %983 = vmatprep.subr.mxu0 %v920
        %984 = vmatpush1.msra.mxu0 %v919
        %985 = vmatprep.subr.mxu0 %v922
        %986 = vmatpush1.msra.mxu0 %v921
        %987 = vmatprep.subr.mxu0 %v924
        %988 = vmatpush1.msra.mxu0 %v923
        %989 = vmatprep.subr.mxu0 %v926
        %990 = vmatpush1.msra.mxu0 %v925
        %991 = vmatprep.subr.mxu0 %v928
        %992 = vmatpush1.msra.mxu0 %v927
        %993 = vmatprep.subr.mxu0 %v930
        %994 = vmatpush1.msra.mxu0 %v929
        %995 = vmatprep.subr.mxu0 %v932
        %996 = vmatpush1.msra.mxu0 %v931
        %997 = vmatprep.subr.mxu0 %v934
        %998 = vmatpush1.msra.mxu0 %v933
        %999 = vmatprep.subr.mxu0 %v936
        %1000 = vmatpush1.msra.mxu0 %v935
        %1001 = vmatprep.subr.mxu0 %v938
        %1002 = vmatpush1.msra.mxu0 %v937
        %1003 = vmatprep.subr.mxu0 %v940
        %1004 = vmatpush1.msra.mxu0 %v939
        %1005 = vmatprep.subr.mxu0 %v942
        %1006 = vmatpush1.msra.mxu0 %v941
        %1007 = vmatprep.subr.mxu0 %v944
        %1008 = vmatpush1.msra.mxu0 %v943
        %1009 = vmatprep.subr.mxu0 %v946
        %1010 = vmatpush1.msra.mxu0 %v945
        %1011 = vmatprep.subr.mxu0 %v948
        %1012 = vmatpush1.msra.mxu0 %v947
        %1013 = vmatprep.subr.mxu0 %v950
        %1014 = vmatpush1.msra.mxu0 %v949
        %1015 = vmatprep.subr.mxu0 %v952
        %1016 = vmatpush1.msra.mxu0 %v951
        %1017 = vmatprep.subr.mxu0 %v954
        %1018 = vmatpush1.msra.mxu0 %v953
        %1019 = vmatprep.subr.mxu0 0.0
        %1020 = vmatpush1.msra.mxu0 0.0
        %1021 = vmatprep.subr.mxu0 0.0
        %1022 = vmatpush1.msra.mxu0 0.0
        %1023 = vmatprep.subr.mxu0 0.0
        %1024 = vmatpush1.msra.mxu0 0.0
        %1025 = vmatprep.subr.mxu0 0.0
        %1026 = vmatpush1.msra.mxu0 0.0
        %1027 = vmatprep.mubr.f32.mxu0 %v961
        %1028 = vmatmul.mubr.f32.gmra.mrb[0].mxu0 %v957
        %v1029 = vpop.f32.mrb[0].mxu0
        %v1030 = vadd.f32 0.0, %v1029
        %v1031 = vpop.f32.mrb[0].mxu0
        %v1032 = vadd.f32 0.0, %v1031
        %1033 = vdwg.mxu0
        %v1034 = vsel %vm960, %v842, 0
        %1036 = vmatprep.subr.mxu0 %v844
        %1037 = vmatpush1.msra.mxu0 %v843
        %1038 = vmatprep.subr.mxu0 %v846
        %1039 = vmatpush1.msra.mxu0 %v845
        %1040 = vmatprep.subr.mxu0 %v848
        %1041 = vmatpush1.msra.mxu0 %v847
        %1042 = vmatprep.subr.mxu0 %v850
        %1043 = vmatpush1.msra.mxu0 %v849
        %1044 = vmatprep.subr.mxu0 %v852
        %1045 = vmatpush1.msra.mxu0 %v851
        %1046 = vmatprep.subr.mxu0 %v854
        %1047 = vmatpush1.msra.mxu0 %v853
        %1048 = vmatprep.subr.mxu0 %v856
        %1049 = vmatpush1.msra.mxu0 %v855
        %1050 = vmatprep.subr.mxu0 %v858
        %1051 = vmatpush1.msra.mxu0 %v857
        %1052 = vmatprep.subr.mxu0 %v860
        %1053 = vmatpush1.msra.mxu0 %v859
        %1054 = vmatprep.subr.mxu0 %v862
        %1055 = vmatpush1.msra.mxu0 %v861
        %1056 = vmatprep.subr.mxu0 %v864
        %1057 = vmatpush1.msra.mxu0 %v863
        %1058 = vmatprep.subr.mxu0 %v866
        %1059 = vmatpush1.msra.mxu0 %v865
        %1060 = vmatprep.subr.mxu0 %v868
        %1061 = vmatpush1.msra.mxu0 %v867
        %1062 = vmatprep.subr.mxu0 %v870
        %1063 = vmatpush1.msra.mxu0 %v869
        %1064 = vmatprep.subr.mxu0 %v872
        %1065 = vmatpush1.msra.mxu0 %v871
        %1066 = vmatprep.subr.mxu0 %v874
        %1067 = vmatpush1.msra.mxu0 %v873
        %1068 = vmatprep.subr.mxu0 %v876
        %1069 = vmatpush1.msra.mxu0 %v875
        %1070 = vmatprep.subr.mxu0 %v878
        %1071 = vmatpush1.msra.mxu0 %v877
        %1072 = vmatprep.subr.mxu0 %v880
        %1073 = vmatpush1.msra.mxu0 %v879
        %1074 = vmatprep.subr.mxu0 %v882
        %1075 = vmatpush1.msra.mxu0 %v881
        %1076 = vmatprep.subr.mxu0 %v884
        %1077 = vmatpush1.msra.mxu0 %v883
        %1078 = vmatprep.subr.mxu0 %v886
        %1079 = vmatpush1.msra.mxu0 %v885
        %1080 = vmatprep.subr.mxu0 %v888
        %1081 = vmatpush1.msra.mxu0 %v887
        %1082 = vmatprep.subr.mxu0 %v890
        %1083 = vmatpush1.msra.mxu0 %v889
        %1084 = vmatprep.subr.mxu0 %v892
        %1085 = vmatpush1.msra.mxu0 %v891
        %1086 = vmatprep.subr.mxu0 %v894
        %1087 = vmatpush1.msra.mxu0 %v893
        %1088 = vmatprep.subr.mxu0 %v896
        %1089 = vmatpush1.msra.mxu0 %v895
        %1090 = vmatprep.subr.mxu0 %v898
        %1091 = vmatpush1.msra.mxu0 %v897
        %1092 = vmatprep.subr.mxu0 0.0
        %1093 = vmatpush1.msra.mxu0 0.0
        %1094 = vmatprep.subr.mxu0 0.0
        %1095 = vmatpush1.msra.mxu0 0.0
        %1096 = vmatprep.subr.mxu0 0.0
        %1097 = vmatpush1.msra.mxu0 0.0
        %1098 = vmatprep.subr.mxu0 0.0
        %1099 = vmatpush1.msra.mxu0 0.0
        %1100 = vmatprep.mubr.f32.mxu0 %v1034
        %1101 = vmatmul.mubr.f32.gmra.mrb[0].mxu0 %v841
        %v1102 = vpop.f32.mrb[0].mxu0
        %v1103 = vadd.f32 %v1030, %v1102
        %v1104 = vpop.f32.mrb[0].mxu0
        %v1105 = vadd.f32 %v1032, %v1104
        %1106 = vdwg.mxu0
        %v1107 = vld [vmem:[%s3 + $0x380] sm:$0xff]
        %v1108 = vld [vmem:[%s3 + $0x388] sm:$0xff]
        %v1109 = vld [vmem:[%s3 + $0x390] sm:$0xff]
        %v1110 = vld [vmem:[%s3 + $0x398] sm:$0xff]
        %v1111 = vld [vmem:[%s3 + $0x3a0] sm:$0xff]
        %v1112 = vld [vmem:[%s3 + $0x3a8] sm:$0xff]
        %v1113 = vld [vmem:[%s3 + $0x3b0] sm:$0xff]
        %v1114 = vld [vmem:[%s3 + $0x3b8] sm:$0xff]
        %v1115 = vld [vmem:[%s3 + $0x3c0] sm:$0xff]
        %v1116 = vld [vmem:[%s3 + $0x3c8] sm:$0xff]
        %v1117 = vld [vmem:[%s3 + $0x3d0] sm:$0xff]
        %v1118 = vld [vmem:[%s3 + $0x3d8] sm:$0xff]
        %v1119 = vld [vmem:[%s3 + $0x3e0] sm:$0xff]
        %v1120 = vld [vmem:[%s3 + $0x3e8] sm:$0xff]
        %v1121 = vld [vmem:[%s3 + $0x3f0] sm:$0xff]
        %v1122 = vld [vmem:[%s3 + $0x3f8] sm:$0xff]
        %v1123 = vld [vmem:[%s3 + $0x400] sm:$0xff]
        %v1124 = vld [vmem:[%s3 + $0x408] sm:$0xff]
        %v1125 = vld [vmem:[%s3 + $0x410] sm:$0xff]
        %v1126 = vld [vmem:[%s3 + $0x418] sm:$0xff]
        %v1127 = vld [vmem:[%s3 + $0x420] sm:$0xff]
        %v1128 = vld [vmem:[%s3 + $0x428] sm:$0xff]
        %v1129 = vld [vmem:[%s3 + $0x430] sm:$0xff]
        %v1130 = vld [vmem:[%s3 + $0x438] sm:$0xff]
        %v1131 = vld [vmem:[%s3 + $0x440] sm:$0xff]
        %v1132 = vld [vmem:[%s3 + $0x448] sm:$0xff]
        %v1133 = vld [vmem:[%s3 + $0x450] sm:$0xff]
        %v1134 = vld [vmem:[%s3 + $0x458] sm:$0xff]
        %v1135 = vld [vmem:[%s3 + $0x460] sm:$0xff]
        %v1136 = vld [vmem:[%s3 + $0x468] sm:$0xff]
        %v1137 = vld [vmem:[%s3 + $0x470] sm:$0xff]
        %v1138 = vld [vmem:[%s3 + $0x478] sm:$0xff]
        %v1139 = vld [vmem:[%s3 + $0x480] sm:$0xff]
        %v1140 = vld [vmem:[%s3 + $0x488] sm:$0xff]
        %v1141 = vld [vmem:[%s3 + $0x490] sm:$0xff]
        %v1142 = vld [vmem:[%s3 + $0x498] sm:$0xff]
        %v1143 = vld [vmem:[%s3 + $0x4a0] sm:$0xff]
        %v1144 = vld [vmem:[%s3 + $0x4a8] sm:$0xff]
        %v1145 = vld [vmem:[%s3 + $0x4b0] sm:$0xff]
        %v1146 = vld [vmem:[%s3 + $0x4b8] sm:$0xff]
        %v1147 = vld [vmem:[%s3 + $0x4c0] sm:$0xff]
        %v1148 = vld [vmem:[%s3 + $0x4c8] sm:$0xff]
        %v1149 = vld [vmem:[%s3 + $0x4d0] sm:$0xff]
        %v1150 = vld [vmem:[%s3 + $0x4d8] sm:$0xff]
        %v1151 = vld [vmem:[%s3 + $0x4e0] sm:$0xff]
        %v1152 = vld [vmem:[%s3 + $0x4e8] sm:$0xff]
        %v1153 = vld [vmem:[%s3 + $0x4f0] sm:$0xff]
        %v1154 = vld [vmem:[%s3 + $0x4f8] sm:$0xff]
        %v1155 = vld [vmem:[%s3 + $0x500] sm:$0xff]
        %v1156 = vld [vmem:[%s3 + $0x508] sm:$0xff]
        %v1157 = vld [vmem:[%s3 + $0x510] sm:$0xff]
        %v1158 = vld [vmem:[%s3 + $0x518] sm:$0xff]
        %v1159 = vld [vmem:[%s3 + $0x520] sm:$0xff]
        %v1160 = vld [vmem:[%s3 + $0x528] sm:$0xff]
        %v1161 = vld [vmem:[%s3 + $0x530] sm:$0xff]
        %v1162 = vld [vmem:[%s3 + $0x538] sm:$0xff]
        %v1163 = vrot.slane %v841, 2
        %v1164 = vrot.slane %v842, 2
        %v1166 = vsel %vm960, %v1164, 0
        %1168 = vmatprep.subr.mxu0 %v1108
        %1169 = vmatpush1.msra.mxu0 %v1107
        %1170 = vmatprep.subr.mxu0 %v1110
        %1171 = vmatpush1.msra.mxu0 %v1109
        %1172 = vmatprep.subr.mxu0 %v1112
        %1173 = vmatpush1.msra.mxu0 %v1111
        %1174 = vmatprep.subr.mxu0 %v1114
        %1175 = vmatpush1.msra.mxu0 %v1113
        %1176 = vmatprep.subr.mxu0 %v1116
        %1177 = vmatpush1.msra.mxu0 %v1115
        %1178 = vmatprep.subr.mxu0 %v1118
        %1179 = vmatpush1.msra.mxu0 %v1117
        %1180 = vmatprep.subr.mxu0 %v1120
        %1181 = vmatpush1.msra.mxu0 %v1119
        %1182 = vmatprep.subr.mxu0 %v1122
        %1183 = vmatpush1.msra.mxu0 %v1121
        %1184 = vmatprep.subr.mxu0 %v1124
        %1185 = vmatpush1.msra.mxu0 %v1123
        %1186 = vmatprep.subr.mxu0 %v1126
        %1187 = vmatpush1.msra.mxu0 %v1125
        %1188 = vmatprep.subr.mxu0 %v1128
        %1189 = vmatpush1.msra.mxu0 %v1127
        %1190 = vmatprep.subr.mxu0 %v1130
        %1191 = vmatpush1.msra.mxu0 %v1129
        %1192 = vmatprep.subr.mxu0 %v1132
        %1193 = vmatpush1.msra.mxu0 %v1131
        %1194 = vmatprep.subr.mxu0 %v1134
        %1195 = vmatpush1.msra.mxu0 %v1133
        %1196 = vmatprep.subr.mxu0 %v1136
        %1197 = vmatpush1.msra.mxu0 %v1135
        %1198 = vmatprep.subr.mxu0 %v1138
        %1199 = vmatpush1.msra.mxu0 %v1137
        %1200 = vmatprep.subr.mxu0 %v1140
        %1201 = vmatpush1.msra.mxu0 %v1139
        %1202 = vmatprep.subr.mxu0 %v1142
        %1203 = vmatpush1.msra.mxu0 %v1141
        %1204 = vmatprep.subr.mxu0 %v1144
        %1205 = vmatpush1.msra.mxu0 %v1143
        %1206 = vmatprep.subr.mxu0 %v1146
        %1207 = vmatpush1.msra.mxu0 %v1145
        %1208 = vmatprep.subr.mxu0 %v1148
        %1209 = vmatpush1.msra.mxu0 %v1147
        %1210 = vmatprep.subr.mxu0 %v1150
        %1211 = vmatpush1.msra.mxu0 %v1149
        %1212 = vmatprep.subr.mxu0 %v1152
        %1213 = vmatpush1.msra.mxu0 %v1151
        %1214 = vmatprep.subr.mxu0 %v1154
        %1215 = vmatpush1.msra.mxu0 %v1153
        %1216 = vmatprep.subr.mxu0 %v1156
        %1217 = vmatpush1.msra.mxu0 %v1155
        %1218 = vmatprep.subr.mxu0 %v1158
        %1219 = vmatpush1.msra.mxu0 %v1157
        %1220 = vmatprep.subr.mxu0 %v1160
        %1221 = vmatpush1.msra.mxu0 %v1159
        %1222 = vmatprep.subr.mxu0 %v1162
        %1223 = vmatpush1.msra.mxu0 %v1161
        %1224 = vmatprep.subr.mxu0 0.0
        %1225 = vmatpush1.msra.mxu0 0.0
        %1226 = vmatprep.subr.mxu0 0.0
        %1227 = vmatpush1.msra.mxu0 0.0
        %1228 = vmatprep.subr.mxu0 0.0
        %1229 = vmatpush1.msra.mxu0 0.0
        %1230 = vmatprep.subr.mxu0 0.0
        %1231 = vmatpush1.msra.mxu0 0.0
        %1232 = vmatprep.mubr.f32.mxu0 %v1166
        %1233 = vmatmul.mubr.f32.gmra.mrb[0].mxu0 %v1163
        %v1234 = vpop.f32.mrb[0].mxu0
        %v1235 = vadd.f32 0.0, %v1234
        %v1236 = vpop.f32.mrb[0].mxu0
        %v1237 = vadd.f32 0.0, %v1236
        %1238 = vdwg.mxu0
        %v1239 = vadd.f32 %v1103, %v1235
        %v1240 = vadd.f32 %v1105, %v1237
        %v1241 = vld [vmem:[%s4] sm:$0x3]
        %v1243 = vlaneseq
        %v1244 = vshrl.u32 %v1243, 7
        %v1245 = vsub.s32 0, %v1244
        %v1246 = vrot.slane %v1241, %v1245
        %v1247 = vlaneseq
        %v1248 = vshrl.u32 %v1247, 7
        %v1249 = vsub.s32 1, %v1248
        %v1250 = vrot.slane %v1241, %v1249
        %v1253 = vadd.f32 %v1239, %v1246
        %v1254 = vadd.f32 %v1240, %v1250
        %v1255 = vmax.f32 %v1253, 0.0
        %v1256 = vmax.f32 %v1254, 0.0
        %v1257 = vld [vmem:[%s5] sm:$0xff]
        %v1258 = vld [vmem:[%s5 + $0x8] sm:$0xff]
        %v1259 = vld [vmem:[%s5 + $0x10] sm:$0xff]
        %v1260 = vld [vmem:[%s5 + $0x18] sm:$0xff]
        %v1261 = vld [vmem:[%s5 + $0x20] sm:$0xff]
        %v1262 = vld [vmem:[%s5 + $0x28] sm:$0xff]
        %v1263 = vld [vmem:[%s5 + $0x30] sm:$0xff]
        %v1264 = vld [vmem:[%s5 + $0x38] sm:$0xff]
        %v1265 = vld [vmem:[%s5 + $0x40] sm:$0xff]
        %v1266 = vld [vmem:[%s5 + $0x48] sm:$0xff]
        %v1267 = vld [vmem:[%s5 + $0x50] sm:$0xff]
        %v1268 = vld [vmem:[%s5 + $0x58] sm:$0xff]
        %v1269 = vld [vmem:[%s5 + $0x60] sm:$0xff]
        %v1270 = vld [vmem:[%s5 + $0x68] sm:$0xff]
        %v1271 = vld [vmem:[%s5 + $0x70] sm:$0xff]
        %v1272 = vld [vmem:[%s5 + $0x78] sm:$0xff]
        %v1273 = vld [vmem:[%s5 + $0x80] sm:$0xff]
        %v1274 = vld [vmem:[%s5 + $0x88] sm:$0xff]
        %v1275 = vld [vmem:[%s5 + $0x90] sm:$0xff]
        %v1276 = vld [vmem:[%s5 + $0x98] sm:$0xff]
        %v1277 = vld [vmem:[%s5 + $0xa0] sm:$0xff]
        %v1278 = vld [vmem:[%s5 + $0xa8] sm:$0xff]
        %v1279 = vld [vmem:[%s5 + $0xb0] sm:$0xff]
        %v1280 = vld [vmem:[%s5 + $0xb8] sm:$0xff]
        %v1281 = vld [vmem:[%s5 + $0xc0] sm:$0xff]
        %v1282 = vld [vmem:[%s5 + $0xc8] sm:$0xff]
        %v1283 = vld [vmem:[%s5 + $0xd0] sm:$0xff]
        %v1284 = vld [vmem:[%s5 + $0xd8] sm:$0xff]
        %v1285 = vld [vmem:[%s5 + $0xe0] sm:$0xff]
        %v1286 = vld [vmem:[%s5 + $0xe8] sm:$0xff]
        %v1287 = vld [vmem:[%s5 + $0xf0] sm:$0xff]
        %v1288 = vld [vmem:[%s5 + $0xf8] sm:$0xff]
        %v1289 = vld [vmem:[%s5 + $0x100] sm:$0xff]
        %v1290 = vld [vmem:[%s5 + $0x108] sm:$0xff]
        %v1291 = vld [vmem:[%s5 + $0x110] sm:$0xff]
        %v1292 = vld [vmem:[%s5 + $0x118] sm:$0xff]
        %v1293 = vld [vmem:[%s5 + $0x120] sm:$0xff]
        %v1294 = vld [vmem:[%s5 + $0x128] sm:$0xff]
        %v1295 = vld [vmem:[%s5 + $0x130] sm:$0xff]
        %v1296 = vld [vmem:[%s5 + $0x138] sm:$0xff]
        %v1297 = vld [vmem:[%s5 + $0x140] sm:$0xff]
        %v1298 = vld [vmem:[%s5 + $0x148] sm:$0xff]
        %v1299 = vld [vmem:[%s5 + $0x150] sm:$0xff]
        %v1300 = vld [vmem:[%s5 + $0x158] sm:$0xff]
        %v1301 = vld [vmem:[%s5 + $0x160] sm:$0xff]
        %v1302 = vld [vmem:[%s5 + $0x168] sm:$0xff]
        %v1303 = vld [vmem:[%s5 + $0x170] sm:$0xff]
        %v1304 = vld [vmem:[%s5 + $0x178] sm:$0xff]
        %v1305 = vld [vmem:[%s5 + $0x180] sm:$0xff]
        %v1306 = vld [vmem:[%s5 + $0x188] sm:$0xff]
        %v1307 = vld [vmem:[%s5 + $0x190] sm:$0xff]
        %v1308 = vld [vmem:[%s5 + $0x198] sm:$0xff]
        %v1309 = vld [vmem:[%s5 + $0x1a0] sm:$0xff]
        %v1310 = vld [vmem:[%s5 + $0x1a8] sm:$0xff]
        %v1311 = vld [vmem:[%s5 + $0x1b0] sm:$0xff]
        %v1312 = vld [vmem:[%s5 + $0x1b8] sm:$0xff]
        %v1313 = vld [vmem:[%s5 + $0x1c0] sm:$0xff]
        %v1314 = vld [vmem:[%s5 + $0x1c8] sm:$0xff]
        %v1315 = vld [vmem:[%s5 + $0x1d0] sm:$0xff]
        %v1316 = vld [vmem:[%s5 + $0x1d8] sm:$0xff]
        %v1317 = vld [vmem:[%s5 + $0x1e0] sm:$0xff]
        %v1318 = vld [vmem:[%s5 + $0x1e8] sm:$0xff]
        %v1319 = vld [vmem:[%s5 + $0x1f0] sm:$0xff]
        %v1320 = vld [vmem:[%s5 + $0x1f8] sm:$0xff]
        %v1321 = vld [vmem:[%s5 + $0x200] sm:$0xff]
        %v1322 = vld [vmem:[%s5 + $0x208] sm:$0xff]
        %v1323 = vld [vmem:[%s5 + $0x210] sm:$0xff]
        %v1324 = vld [vmem:[%s5 + $0x218] sm:$0xff]
        %v1325 = vld [vmem:[%s5 + $0x220] sm:$0xff]
        %v1326 = vld [vmem:[%s5 + $0x228] sm:$0xff]
        %v1327 = vld [vmem:[%s5 + $0x230] sm:$0xff]
        %v1328 = vld [vmem:[%s5 + $0x238] sm:$0xff]
        %v1329 = vld [vmem:[%s5 + $0x240] sm:$0xff]
        %v1330 = vld [vmem:[%s5 + $0x248] sm:$0xff]
        %v1331 = vld [vmem:[%s5 + $0x250] sm:$0xff]
        %v1332 = vld [vmem:[%s5 + $0x258] sm:$0xff]
        %v1333 = vld [vmem:[%s5 + $0x260] sm:$0xff]
        %v1334 = vld [vmem:[%s5 + $0x268] sm:$0xff]
        %v1335 = vld [vmem:[%s5 + $0x270] sm:$0xff]
        %v1336 = vld [vmem:[%s5 + $0x278] sm:$0xff]
        %v1339 = vrot.slane %v1255, 1
        %v1340 = vrot.slane %v1256, 1
        %vm1342 = vcmask 261120
        %v1343 = vsel %vm1342, %v1340, 0
        %1345 = vmatprep.subr.mxu0 %v1298
        %1346 = vmatpush1.msra.mxu0 %v1297
        %1347 = vmatprep.subr.mxu0 %v1300
        %1348 = vmatpush1.msra.mxu0 %v1299
        %1349 = vmatprep.subr.mxu0 %v1302
        %1350 = vmatpush1.msra.mxu0 %v1301
        %1351 = vmatprep.subr.mxu0 %v1304
        %1352 = vmatpush1.msra.mxu0 %v1303
        %1353 = vmatprep.subr.mxu0 %v1306
        %1354 = vmatpush1.msra.mxu0 %v1305
        %1355 = vmatprep.subr.mxu0 %v1308
        %1356 = vmatpush1.msra.mxu0 %v1307
        %1357 = vmatprep.subr.mxu0 %v1310
        %1358 = vmatpush1.msra.mxu0 %v1309
        %1359 = vmatprep.subr.mxu0 %v1312
        %1360 = vmatpush1.msra.mxu0 %v1311
        %1361 = vmatprep.subr.mxu0 %v1314
        %1362 = vmatpush1.msra.mxu0 %v1313
        %1363 = vmatprep.subr.mxu0 %v1316
        %1364 = vmatpush1.msra.mxu0 %v1315
        %1365 = vmatprep.subr.mxu0 %v1318
        %1366 = vmatpush1.msra.mxu0 %v1317
        %1367 = vmatprep.subr.mxu0 %v1320
        %1368 = vmatpush1.msra.mxu0 %v1319
        %1369 = vmatprep.subr.mxu0 %v1322
        %1370 = vmatpush1.msra.mxu0 %v1321
        %1371 = vmatprep.subr.mxu0 %v1324
        %1372 = vmatpush1.msra.mxu0 %v1323
        %1373 = vmatprep.subr.mxu0 %v1326
        %1374 = vmatpush1.msra.mxu0 %v1325
        %1375 = vmatprep.subr.mxu0 %v1328
        %1376 = vmatpush1.msra.mxu0 %v1327
        %1377 = vmatprep.subr.mxu0 %v1330
        %1378 = vmatpush1.msra.mxu0 %v1329
        %1379 = vmatprep.subr.mxu0 %v1332
        %1380 = vmatpush1.msra.mxu0 %v1331
        %1381 = vmatprep.subr.mxu0 %v1334
        %1382 = vmatpush1.msra.mxu0 %v1333
        %1383 = vmatprep.subr.mxu0 %v1336
        %1384 = vmatpush1.msra.mxu0 %v1335
        %1385 = vmatprep.subr.mxu0 0.0
        %1386 = vmatpush1.msra.mxu0 0.0
        %1387 = vmatprep.subr.mxu0 0.0
        %1388 = vmatpush1.msra.mxu0 0.0
        %1389 = vmatprep.subr.mxu0 0.0
        %1390 = vmatpush1.msra.mxu0 0.0
        %1391 = vmatprep.subr.mxu0 0.0
        %1392 = vmatpush1.msra.mxu0 0.0
        %1393 = vmatprep.subr.mxu0 0.0
        %1394 = vmatpush1.msra.mxu0 0.0
        %1395 = vmatprep.subr.mxu0 0.0
        %1396 = vmatpush1.msra.mxu0 0.0
        %1397 = vmatprep.subr.mxu0 0.0
        %1398 = vmatpush1.msra.mxu0 0.0
        %1399 = vmatprep.subr.mxu0 0.0
        %1400 = vmatpush1.msra.mxu0 0.0
        %1401 = vmatprep.subr.mxu0 0.0
        %1402 = vmatpush1.msra.mxu0 0.0
        %1403 = vmatprep.subr.mxu0 0.0
        %1404 = vmatpush1.msra.mxu0 0.0
        %1405 = vmatprep.subr.mxu0 0.0
        %1406 = vmatpush1.msra.mxu0 0.0
        %1407 = vmatprep.subr.mxu0 0.0
        %1408 = vmatpush1.msra.mxu0 0.0
        %1409 = vmatprep.mubr.f32.mxu0 %v1343
        %1410 = vmatmul.mubr.f32.gmra.mrb[0].mxu0 %v1339
        %v1411 = vpop.f32.mrb[0].mxu0
        %v1412 = vadd.f32 0.0, %v1411
        %v1413 = vpop.f32.mrb[0].mxu0
        %v1414 = vadd.f32 0.0, %v1413
        %1415 = vdwg.mxu0
        %v1416 = vsel %vm1342, %v1256, 0
        %1418 = vmatprep.subr.mxu0 %v1258
        %1419 = vmatpush1.msra.mxu0 %v1257
        %1420 = vmatprep.subr.mxu0 %v1260
        %1421 = vmatpush1.msra.mxu0 %v1259
        %1422 = vmatprep.subr.mxu0 %v1262
        %1423 = vmatpush1.msra.mxu0 %v1261
        %1424 = vmatprep.subr.mxu0 %v1264
        %1425 = vmatpush1.msra.mxu0 %v1263
        %1426 = vmatprep.subr.mxu0 %v1266
        %1427 = vmatpush1.msra.mxu0 %v1265
        %1428 = vmatprep.subr.mxu0 %v1268
        %1429 = vmatpush1.msra.mxu0 %v1267
        %1430 = vmatprep.subr.mxu0 %v1270
        %1431 = vmatpush1.msra.mxu0 %v1269
        %1432 = vmatprep.subr.mxu0 %v1272
        %1433 = vmatpush1.msra.mxu0 %v1271
        %1434 = vmatprep.subr.mxu0 %v1274
        %1435 = vmatpush1.msra.mxu0 %v1273
        %1436 = vmatprep.subr.mxu0 %v1276
        %1437 = vmatpush1.msra.mxu0 %v1275
        %1438 = vmatprep.subr.mxu0 %v1278
        %1439 = vmatpush1.msra.mxu0 %v1277
        %1440 = vmatprep.subr.mxu0 %v1280
        %1441 = vmatpush1.msra.mxu0 %v1279
        %1442 = vmatprep.subr.mxu0 %v1282
        %1443 = vmatpush1.msra.mxu0 %v1281
        %1444 = vmatprep.subr.mxu0 %v1284
        %1445 = vmatpush1.msra.mxu0 %v1283
        %1446 = vmatprep.subr.mxu0 %v1286
        %1447 = vmatpush1.msra.mxu0 %v1285
        %1448 = vmatprep.subr.mxu0 %v1288
        %1449 = vmatpush1.msra.mxu0 %v1287
        %1450 = vmatprep.subr.mxu0 %v1290
        %1451 = vmatpush1.msra.mxu0 %v1289
        %1452 = vmatprep.subr.mxu0 %v1292
        %1453 = vmatpush1.msra.mxu0 %v1291
        %1454 = vmatprep.subr.mxu0 %v1294
        %1455 = vmatpush1.msra.mxu0 %v1293
        %1456 = vmatprep.subr.mxu0 %v1296
        %1457 = vmatpush1.msra.mxu0 %v1295
        %1458 = vmatprep.subr.mxu0 0.0
        %1459 = vmatpush1.msra.mxu0 0.0
        %1460 = vmatprep.subr.mxu0 0.0
        %1461 = vmatpush1.msra.mxu0 0.0
        %1462 = vmatprep.subr.mxu0 0.0
        %1463 = vmatpush1.msra.mxu0 0.0
        %1464 = vmatprep.subr.mxu0 0.0
        %1465 = vmatpush1.msra.mxu0 0.0
        %1466 = vmatprep.subr.mxu0 0.0
        %1467 = vmatpush1.msra.mxu0 0.0
        %1468 = vmatprep.subr.mxu0 0.0
        %1469 = vmatpush1.msra.mxu0 0.0
        %1470 = vmatprep.subr.mxu0 0.0
        %1471 = vmatpush1.msra.mxu0 0.0
        %1472 = vmatprep.subr.mxu0 0.0
        %1473 = vmatpush1.msra.mxu0 0.0
        %1474 = vmatprep.subr.mxu0 0.0
        %1475 = vmatpush1.msra.mxu0 0.0
        %1476 = vmatprep.subr.mxu0 0.0
        %1477 = vmatpush1.msra.mxu0 0.0
        %1478 = vmatprep.subr.mxu0 0.0
        %1479 = vmatpush1.msra.mxu0 0.0
        %1480 = vmatprep.subr.mxu0 0.0
        %1481 = vmatpush1.msra.mxu0 0.0
        %1482 = vmatprep.mubr.f32.mxu0 %v1416
        %1483 = vmatmul.mubr.f32.gmra.mrb[0].mxu0 %v1255
        %v1484 = vpop.f32.mrb[0].mxu0
        %v1485 = vadd.f32 %v1412, %v1484
        %v1486 = vpop.f32.mrb[0].mxu0
        %v1487 = vadd.f32 %v1414, %v1486
        %1488 = vdwg.mxu0
        %v1489 = vld [vmem:[%s5 + $0x280] sm:$0xff]
        %v1490 = vld [vmem:[%s5 + $0x288] sm:$0xff]
        %v1491 = vld [vmem:[%s5 + $0x290] sm:$0xff]
        %v1492 = vld [vmem:[%s5 + $0x298] sm:$0xff]
        %v1493 = vld [vmem:[%s5 + $0x2a0] sm:$0xff]
        %v1494 = vld [vmem:[%s5 + $0x2a8] sm:$0xff]
        %v1495 = vld [vmem:[%s5 + $0x2b0] sm:$0xff]
        %v1496 = vld [vmem:[%s5 + $0x2b8] sm:$0xff]
        %v1497 = vld [vmem:[%s5 + $0x2c0] sm:$0xff]
        %v1498 = vld [vmem:[%s5 + $0x2c8] sm:$0xff]
        %v1499 = vld [vmem:[%s5 + $0x2d0] sm:$0xff]
        %v1500 = vld [vmem:[%s5 + $0x2d8] sm:$0xff]
        %v1501 = vld [vmem:[%s5 + $0x2e0] sm:$0xff]
        %v1502 = vld [vmem:[%s5 + $0x2e8] sm:$0xff]
        %v1503 = vld [vmem:[%s5 + $0x2f0] sm:$0xff]
        %v1504 = vld [vmem:[%s5 + $0x2f8] sm:$0xff]
        %v1505 = vld [vmem:[%s5 + $0x300] sm:$0xff]
        %v1506 = vld [vmem:[%s5 + $0x308] sm:$0xff]
        %v1507 = vld [vmem:[%s5 + $0x310] sm:$0xff]
        %v1508 = vld [vmem:[%s5 + $0x318] sm:$0xff]
        %v1509 = vld [vmem:[%s5 + $0x320] sm:$0xff]
        %v1510 = vld [vmem:[%s5 + $0x328] sm:$0xff]
        %v1511 = vld [vmem:[%s5 + $0x330] sm:$0xff]
        %v1512 = vld [vmem:[%s5 + $0x338] sm:$0xff]
        %v1513 = vld [vmem:[%s5 + $0x340] sm:$0xff]
        %v1514 = vld [vmem:[%s5 + $0x348] sm:$0xff]
        %v1515 = vld [vmem:[%s5 + $0x350] sm:$0xff]
        %v1516 = vld [vmem:[%s5 + $0x358] sm:$0xff]
        %v1517 = vld [vmem:[%s5 + $0x360] sm:$0xff]
        %v1518 = vld [vmem:[%s5 + $0x368] sm:$0xff]
        %v1519 = vld [vmem:[%s5 + $0x370] sm:$0xff]
        %v1520 = vld [vmem:[%s5 + $0x378] sm:$0xff]
        %v1521 = vld [vmem:[%s5 + $0x380] sm:$0xff]
        %v1522 = vld [vmem:[%s5 + $0x388] sm:$0xff]
        %v1523 = vld [vmem:[%s5 + $0x390] sm:$0xff]
        %v1524 = vld [vmem:[%s5 + $0x398] sm:$0xff]
        %v1525 = vld [vmem:[%s5 + $0x3a0] sm:$0xff]
        %v1526 = vld [vmem:[%s5 + $0x3a8] sm:$0xff]
        %v1527 = vld [vmem:[%s5 + $0x3b0] sm:$0xff]
        %v1528 = vld [vmem:[%s5 + $0x3b8] sm:$0xff]
        %v1529 = vrot.slane %v1255, 2
        %v1530 = vrot.slane %v1256, 2
        %v1532 = vsel %vm1342, %v1530, 0
        %1534 = vmatprep.subr.mxu0 %v1490
        %1535 = vmatpush1.msra.mxu0 %v1489
        %1536 = vmatprep.subr.mxu0 %v1492
        %1537 = vmatpush1.msra.mxu0 %v1491
        %1538 = vmatprep.subr.mxu0 %v1494
        %1539 = vmatpush1.msra.mxu0 %v1493
        %1540 = vmatprep.subr.mxu0 %v1496
        %1541 = vmatpush1.msra.mxu0 %v1495
        %1542 = vmatprep.subr.mxu0 %v1498
        %1543 = vmatpush1.msra.mxu0 %v1497
        %1544 = vmatprep.subr.mxu0 %v1500
        %1545 = vmatpush1.msra.mxu0 %v1499
        %1546 = vmatprep.subr.mxu0 %v1502
        %1547 = vmatpush1.msra.mxu0 %v1501
        %1548 = vmatprep.subr.mxu0 %v1504
        %1549 = vmatpush1.msra.mxu0 %v1503
        %1550 = vmatprep.subr.mxu0 %v1506
        %1551 = vmatpush1.msra.mxu0 %v1505
        %1552 = vmatprep.subr.mxu0 %v1508
        %1553 = vmatpush1.msra.mxu0 %v1507
        %1554 = vmatprep.subr.mxu0 %v1510
        %1555 = vmatpush1.msra.mxu0 %v1509
        %1556 = vmatprep.subr.mxu0 %v1512
        %1557 = vmatpush1.msra.mxu0 %v1511
        %1558 = vmatprep.subr.mxu0 %v1514
        %1559 = vmatpush1.msra.mxu0 %v1513
        %1560 = vmatprep.subr.mxu0 %v1516
        %1561 = vmatpush1.msra.mxu0 %v1515
        %1562 = vmatprep.subr.mxu0 %v1518
        %1563 = vmatpush1.msra.mxu0 %v1517
        %1564 = vmatprep.subr.mxu0 %v1520
        %1565 = vmatpush1.msra.mxu0 %v1519
        %1566 = vmatprep.subr.mxu0 %v1522
        %1567 = vmatpush1.msra.mxu0 %v1521
        %1568 = vmatprep.subr.mxu0 %v1524
        %1569 = vmatpush1.msra.mxu0 %v1523
        %1570 = vmatprep.subr.mxu0 %v1526
        %1571 = vmatpush1.msra.mxu0 %v1525
        %1572 = vmatprep.subr.mxu0 %v1528
        %1573 = vmatpush1.msra.mxu0 %v1527
        %1574 = vmatprep.subr.mxu0 0.0
        %1575 = vmatpush1.msra.mxu0 0.0
        %1576 = vmatprep.subr.mxu0 0.0
        %1577 = vmatpush1.msra.mxu0 0.0
        %1578 = vmatprep.subr.mxu0 0.0
        %1579 = vmatpush1.msra.mxu0 0.0
        %1580 = vmatprep.subr.mxu0 0.0
        %1581 = vmatpush1.msra.mxu0 0.0
        %1582 = vmatprep.subr.mxu0 0.0
        %1583 = vmatpush1.msra.mxu0 0.0
        %1584 = vmatprep.subr.mxu0 0.0
        %1585 = vmatpush1.msra.mxu0 0.0
        %1586 = vmatprep.subr.mxu0 0.0
        %1587 = vmatpush1.msra.mxu0 0.0
        %1588 = vmatprep.subr.mxu0 0.0
        %1589 = vmatpush1.msra.mxu0 0.0
        %1590 = vmatprep.subr.mxu0 0.0
        %1591 = vmatpush1.msra.mxu0 0.0
        %1592 = vmatprep.subr.mxu0 0.0
        %1593 = vmatpush1.msra.mxu0 0.0
        %1594 = vmatprep.subr.mxu0 0.0
        %1595 = vmatpush1.msra.mxu0 0.0
        %1596 = vmatprep.subr.mxu0 0.0
        %1597 = vmatpush1.msra.mxu0 0.0
        %1598 = vmatprep.mubr.f32.mxu0 %v1532
        %1599 = vmatmul.mubr.f32.gmra.mrb[0].mxu0 %v1529
        %v1600 = vpop.f32.mrb[0].mxu0
        %v1601 = vadd.f32 0.0, %v1600
        %v1602 = vpop.f32.mrb[0].mxu0
        %v1603 = vadd.f32 0.0, %v1602
        %1604 = vdwg.mxu0
        %v1605 = vadd.f32 %v1485, %v1601
        %v1606 = vadd.f32 %v1487, %v1603
        %v1607 = vld [vmem:[%s5 + $0x3c0] sm:$0xff]
        %v1608 = vld [vmem:[%s5 + $0x3c8] sm:$0xff]
        %v1609 = vld [vmem:[%s5 + $0x3d0] sm:$0xff]
        %v1610 = vld [vmem:[%s5 + $0x3d8] sm:$0xff]
        %v1611 = vld [vmem:[%s5 + $0x3e0] sm:$0xff]
        %v1612 = vld [vmem:[%s5 + $0x3e8] sm:$0xff]
        %v1613 = vld [vmem:[%s5 + $0x3f0] sm:$0xff]
        %v1614 = vld [vmem:[%s5 + $0x3f8] sm:$0xff]
        %v1615 = vld [vmem:[%s5 + $0x400] sm:$0xff]
        %v1616 = vld [vmem:[%s5 + $0x408] sm:$0xff]
        %v1617 = vld [vmem:[%s5 + $0x410] sm:$0xff]
        %v1618 = vld [vmem:[%s5 + $0x418] sm:$0xff]
        %v1619 = vld [vmem:[%s5 + $0x420] sm:$0xff]
        %v1620 = vld [vmem:[%s5 + $0x428] sm:$0xff]
        %v1621 = vld [vmem:[%s5 + $0x430] sm:$0xff]
        %v1622 = vld [vmem:[%s5 + $0x438] sm:$0xff]
        %v1623 = vld [vmem:[%s5 + $0x440] sm:$0xff]
        %v1624 = vld [vmem:[%s5 + $0x448] sm:$0xff]
        %v1625 = vld [vmem:[%s5 + $0x450] sm:$0xff]
        %v1626 = vld [vmem:[%s5 + $0x458] sm:$0xff]
        %v1627 = vld [vmem:[%s5 + $0x460] sm:$0xff]
        %v1628 = vld [vmem:[%s5 + $0x468] sm:$0xff]
        %v1629 = vld [vmem:[%s5 + $0x470] sm:$0xff]
        %v1630 = vld [vmem:[%s5 + $0x478] sm:$0xff]
        %v1631 = vld [vmem:[%s5 + $0x480] sm:$0xff]
        %v1632 = vld [vmem:[%s5 + $0x488] sm:$0xff]
        %v1633 = vld [vmem:[%s5 + $0x490] sm:$0xff]
        %v1634 = vld [vmem:[%s5 + $0x498] sm:$0xff]
        %v1635 = vld [vmem:[%s5 + $0x4a0] sm:$0xff]
        %v1636 = vld [vmem:[%s5 + $0x4a8] sm:$0xff]
        %v1637 = vld [vmem:[%s5 + $0x4b0] sm:$0xff]
        %v1638 = vld [vmem:[%s5 + $0x4b8] sm:$0xff]
        %v1639 = vld [vmem:[%s5 + $0x4c0] sm:$0xff]
        %v1640 = vld [vmem:[%s5 + $0x4c8] sm:$0xff]
        %v1641 = vld [vmem:[%s5 + $0x4d0] sm:$0xff]
        %v1642 = vld [vmem:[%s5 + $0x4d8] sm:$0xff]
        %v1643 = vld [vmem:[%s5 + $0x4e0] sm:$0xff]
        %v1644 = vld [vmem:[%s5 + $0x4e8] sm:$0xff]
        %v1645 = vld [vmem:[%s5 + $0x4f0] sm:$0xff]
        %v1646 = vld [vmem:[%s5 + $0x4f8] sm:$0xff]
        %v1647 = vrot.slane %v1255, 3
        %v1648 = vrot.slane %v1256, 3
        %v1650 = vsel %vm1342, %v1648, 0
        %1652 = vmatprep.subr.mxu0 %v1608
        %1653 = vmatpush1.msra.mxu0 %v1607
        %1654 = vmatprep.subr.mxu0 %v1610
        %1655 = vmatpush1.msra.mxu0 %v1609
        %1656 = vmatprep.subr.mxu0 %v1612
        %1657 = vmatpush1.msra.mxu0 %v1611
        %1658 = vmatprep.subr.mxu0 %v1614
        %1659 = vmatpush1.msra.mxu0 %v1613
        %1660 = vmatprep.subr.mxu0 %v1616
        %1661 = vmatpush1.msra.mxu0 %v1615
        %1662 = vmatprep.subr.mxu0 %v1618
        %1663 = vmatpush1.msra.mxu0 %v1617
        %1664 = vmatprep.subr.mxu0 %v1620
        %1665 = vmatpush1.msra.mxu0 %v1619
        %1666 = vmatprep.subr.mxu0 %v1622
        %1667 = vmatpush1.msra.mxu0 %v1621
        %1668 = vmatprep.subr.mxu0 %v1624
        %1669 = vmatpush1.msra.mxu0 %v1623
        %1670 = vmatprep.subr.mxu0 %v1626
        %1671 = vmatpush1.msra.mxu0 %v1625
        %1672 = vmatprep.subr.mxu0 %v1628
        %1673 = vmatpush1.msra.mxu0 %v1627
        %1674 = vmatprep.subr.mxu0 %v1630
        %1675 = vmatpush1.msra.mxu0 %v1629
        %1676 = vmatprep.subr.mxu0 %v1632
        %1677 = vmatpush1.msra.mxu0 %v1631
        %1678 = vmatprep.subr.mxu0 %v1634
        %1679 = vmatpush1.msra.mxu0 %v1633
        %1680 = vmatprep.subr.mxu0 %v1636
        %1681 = vmatpush1.msra.mxu0 %v1635
        %1682 = vmatprep.subr.mxu0 %v1638
        %1683 = vmatpush1.msra.mxu0 %v1637
        %1684 = vmatprep.subr.mxu0 %v1640
        %1685 = vmatpush1.msra.mxu0 %v1639
        %1686 = vmatprep.subr.mxu0 %v1642
        %1687 = vmatpush1.msra.mxu0 %v1641
        %1688 = vmatprep.subr.mxu0 %v1644
        %1689 = vmatpush1.msra.mxu0 %v1643
        %1690 = vmatprep.subr.mxu0 %v1646
        %1691 = vmatpush1.msra.mxu0 %v1645
        %1692 = vmatprep.subr.mxu0 0.0
        %1693 = vmatpush1.msra.mxu0 0.0
        %1694 = vmatprep.subr.mxu0 0.0
        %1695 = vmatpush1.msra.mxu0 0.0
        %1696 = vmatprep.subr.mxu0 0.0
        %1697 = vmatpush1.msra.mxu0 0.0
        %1698 = vmatprep.subr.mxu0 0.0
        %1699 = vmatpush1.msra.mxu0 0.0
        %1700 = vmatprep.subr.mxu0 0.0
        %1701 = vmatpush1.msra.mxu0 0.0
        %1702 = vmatprep.subr.mxu0 0.0
        %1703 = vmatpush1.msra.mxu0 0.0
        %1704 = vmatprep.subr.mxu0 0.0
        %1705 = vmatpush1.msra.mxu0 0.0
        %1706 = vmatprep.subr.mxu0 0.0
        %1707 = vmatpush1.msra.mxu0 0.0
        %1708 = vmatprep.subr.mxu0 0.0
        %1709 = vmatpush1.msra.mxu0 0.0
        %1710 = vmatprep.subr.mxu0 0.0
        %1711 = vmatpush1.msra.mxu0 0.0
        %1712 = vmatprep.subr.mxu0 0.0
        %1713 = vmatpush1.msra.mxu0 0.0
        %1714 = vmatprep.subr.mxu0 0.0
        %1715 = vmatpush1.msra.mxu0 0.0
        %1716 = vmatprep.mubr.f32.mxu0 %v1650
        %1717 = vmatmul.mubr.f32.gmra.mrb[0].mxu0 %v1647
        %v1718 = vpop.f32.mrb[0].mxu0
        %v1719 = vadd.f32 0.0, %v1718
        %v1720 = vpop.f32.mrb[0].mxu0
        %v1721 = vadd.f32 0.0, %v1720
        %1722 = vdwg.mxu0
        %v1723 = vadd.f32 %v1605, %v1719
        %v1724 = vadd.f32 %v1606, %v1721
        %v1725 = vld [vmem:[%s5 + $0x500] sm:$0xff]
        %v1726 = vld [vmem:[%s5 + $0x508] sm:$0xff]
        %v1727 = vld [vmem:[%s5 + $0x510] sm:$0xff]
        %v1728 = vld [vmem:[%s5 + $0x518] sm:$0xff]
        %v1729 = vld [vmem:[%s5 + $0x520] sm:$0xff]
        %v1730 = vld [vmem:[%s5 + $0x528] sm:$0xff]
        %v1731 = vld [vmem:[%s5 + $0x530] sm:$0xff]
        %v1732 = vld [vmem:[%s5 + $0x538] sm:$0xff]
        %v1733 = vld [vmem:[%s5 + $0x540] sm:$0xff]
        %v1734 = vld [vmem:[%s5 + $0x548] sm:$0xff]
        %v1735 = vld [vmem:[%s5 + $0x550] sm:$0xff]
        %v1736 = vld [vmem:[%s5 + $0x558] sm:$0xff]
        %v1737 = vld [vmem:[%s5 + $0x560] sm:$0xff]
        %v1738 = vld [vmem:[%s5 + $0x568] sm:$0xff]
        %v1739 = vld [vmem:[%s5 + $0x570] sm:$0xff]
        %v1740 = vld [vmem:[%s5 + $0x578] sm:$0xff]
        %v1741 = vld [vmem:[%s5 + $0x580] sm:$0xff]
        %v1742 = vld [vmem:[%s5 + $0x588] sm:$0xff]
        %v1743 = vld [vmem:[%s5 + $0x590] sm:$0xff]
        %v1744 = vld [vmem:[%s5 + $0x598] sm:$0xff]
        %v1745 = vld [vmem:[%s5 + $0x5a0] sm:$0xff]
        %v1746 = vld [vmem:[%s5 + $0x5a8] sm:$0xff]
        %v1747 = vld [vmem:[%s5 + $0x5b0] sm:$0xff]
        %v1748 = vld [vmem:[%s5 + $0x5b8] sm:$0xff]
        %v1749 = vld [vmem:[%s5 + $0x5c0] sm:$0xff]
        %v1750 = vld [vmem:[%s5 + $0x5c8] sm:$0xff]
        %v1751 = vld [vmem:[%s5 + $0x5d0] sm:$0xff]
        %v1752 = vld [vmem:[%s5 + $0x5d8] sm:$0xff]
        %v1753 = vld [vmem:[%s5 + $0x5e0] sm:$0xff]
        %v1754 = vld [vmem:[%s5 + $0x5e8] sm:$0xff]
        %v1755 = vld [vmem:[%s5 + $0x5f0] sm:$0xff]
        %v1756 = vld [vmem:[%s5 + $0x5f8] sm:$0xff]
        %v1757 = vld [vmem:[%s5 + $0x600] sm:$0xff]
        %v1758 = vld [vmem:[%s5 + $0x608] sm:$0xff]
        %v1759 = vld [vmem:[%s5 + $0x610] sm:$0xff]
        %v1760 = vld [vmem:[%s5 + $0x618] sm:$0xff]
        %v1761 = vld [vmem:[%s5 + $0x620] sm:$0xff]
        %v1762 = vld [vmem:[%s5 + $0x628] sm:$0xff]
        %v1763 = vld [vmem:[%s5 + $0x630] sm:$0xff]
        %v1764 = vld [vmem:[%s5 + $0x638] sm:$0xff]
        %v1765 = vrot.slane %v1255, 4
        %v1766 = vrot.slane %v1256, 4
        %v1768 = vsel %vm1342, %v1766, 0
        %1770 = vmatprep.subr.mxu0 %v1726
        %1771 = vmatpush1.msra.mxu0 %v1725
        %1772 = vmatprep.subr.mxu0 %v1728
        %1773 = vmatpush1.msra.mxu0 %v1727
        %1774 = vmatprep.subr.mxu0 %v1730
        %1775 = vmatpush1.msra.mxu0 %v1729
        %1776 = vmatprep.subr.mxu0 %v1732
        %1777 = vmatpush1.msra.mxu0 %v1731
        %1778 = vmatprep.subr.mxu0 %v1734
        %1779 = vmatpush1.msra.mxu0 %v1733
        %1780 = vmatprep.subr.mxu0 %v1736
        %1781 = vmatpush1.msra.mxu0 %v1735
        %1782 = vmatprep.subr.mxu0 %v1738
        %1783 = vmatpush1.msra.mxu0 %v1737
        %1784 = vmatprep.subr.mxu0 %v1740
        %1785 = vmatpush1.msra.mxu0 %v1739
        %1786 = vmatprep.subr.mxu0 %v1742
        %1787 = vmatpush1.msra.mxu0 %v1741
        %1788 = vmatprep.subr.mxu0 %v1744
        %1789 = vmatpush1.msra.mxu0 %v1743
        %1790 = vmatprep.subr.mxu0 %v1746
        %1791 = vmatpush1.msra.mxu0 %v1745
        %1792 = vmatprep.subr.mxu0 %v1748
        %1793 = vmatpush1.msra.mxu0 %v1747
        %1794 = vmatprep.subr.mxu0 %v1750
        %1795 = vmatpush1.msra.mxu0 %v1749
        %1796 = vmatprep.subr.mxu0 %v1752
        %1797 = vmatpush1.msra.mxu0 %v1751
        %1798 = vmatprep.subr.mxu0 %v1754
        %1799 = vmatpush1.msra.mxu0 %v1753
        %1800 = vmatprep.subr.mxu0 %v1756
        %1801 = vmatpush1.msra.mxu0 %v1755
        %1802 = vmatprep.subr.mxu0 %v1758
        %1803 = vmatpush1.msra.mxu0 %v1757
        %1804 = vmatprep.subr.mxu0 %v1760
        %1805 = vmatpush1.msra.mxu0 %v1759
        %1806 = vmatprep.subr.mxu0 %v1762
        %1807 = vmatpush1.msra.mxu0 %v1761
        %1808 = vmatprep.subr.mxu0 %v1764
        %1809 = vmatpush1.msra.mxu0 %v1763
        %1810 = vmatprep.subr.mxu0 0.0
        %1811 = vmatpush1.msra.mxu0 0.0
        %1812 = vmatprep.subr.mxu0 0.0
        %1813 = vmatpush1.msra.mxu0 0.0
        %1814 = vmatprep.subr.mxu0 0.0
        %1815 = vmatpush1.msra.mxu0 0.0
        %1816 = vmatprep.subr.mxu0 0.0
        %1817 = vmatpush1.msra.mxu0 0.0
        %1818 = vmatprep.subr.mxu0 0.0
        %1819 = vmatpush1.msra.mxu0 0.0
        %1820 = vmatprep.subr.mxu0 0.0
        %1821 = vmatpush1.msra.mxu0 0.0
        %1822 = vmatprep.subr.mxu0 0.0
        %1823 = vmatpush1.msra.mxu0 0.0
        %1824 = vmatprep.subr.mxu0 0.0
        %1825 = vmatpush1.msra.mxu0 0.0
        %1826 = vmatprep.subr.mxu0 0.0
        %1827 = vmatpush1.msra.mxu0 0.0
        %1828 = vmatprep.subr.mxu0 0.0
        %1829 = vmatpush1.msra.mxu0 0.0
        %1830 = vmatprep.subr.mxu0 0.0
        %1831 = vmatpush1.msra.mxu0 0.0
        %1832 = vmatprep.subr.mxu0 0.0
        %1833 = vmatpush1.msra.mxu0 0.0
        %1834 = vmatprep.mubr.f32.mxu0 %v1768
        %1835 = vmatmul.mubr.f32.gmra.mrb[0].mxu0 %v1765
        %v1836 = vpop.f32.mrb[0].mxu0
        %v1837 = vadd.f32 0.0, %v1836
        %v1838 = vpop.f32.mrb[0].mxu0
        %v1839 = vadd.f32 0.0, %v1838
        %1840 = vdwg.mxu0
        %v1841 = vadd.f32 %v1723, %v1837
        %v1842 = vadd.f32 %v1724, %v1839
        %v1843 = vld [vmem:[%s6] sm:$0x3]
        %v1845 = vlaneseq
        %v1846 = vshrl.u32 %v1845, 7
        %v1847 = vsub.s32 0, %v1846
        %v1848 = vrot.slane %v1843, %v1847
        %v1849 = vlaneseq
        %v1850 = vshrl.u32 %v1849, 7
        %v1851 = vsub.s32 1, %v1850
        %v1852 = vrot.slane %v1843, %v1851
        %v1855 = vadd.f32 %v1841, %v1848
        %v1856 = vadd.f32 %v1842, %v1852
        %v1857 = vmax.f32 %v1855, 0.0
        %v1858 = vmax.f32 %v1856, 0.0
        %v1859 = vld [vmem:[%s7] sm:$0xff]
        %v1860 = vld [vmem:[%s7 + $0x8] sm:$0xff]
        %v1861 = vld [vmem:[%s7 + $0x10] sm:$0xff]
        %v1862 = vld [vmem:[%s7 + $0x18] sm:$0xff]
        %v1863 = vld [vmem:[%s7 + $0x20] sm:$0xff]
        %v1864 = vld [vmem:[%s7 + $0x28] sm:$0xff]
        %v1865 = vld [vmem:[%s7 + $0x30] sm:$0xff]
        %v1866 = vld [vmem:[%s7 + $0x38] sm:$0xff]
        %v1867 = vld [vmem:[%s7 + $0x40] sm:$0xff]
        %v1868 = vld [vmem:[%s7 + $0x48] sm:$0xff]
        %v1869 = vld [vmem:[%s7 + $0x50] sm:$0xff]
        %v1870 = vld [vmem:[%s7 + $0x58] sm:$0xff]
        %v1871 = vld [vmem:[%s7 + $0x60] sm:$0xff]
        %v1872 = vld [vmem:[%s7 + $0x68] sm:$0xff]
        %v1873 = vld [vmem:[%s7 + $0x70] sm:$0xff]
        %v1874 = vld [vmem:[%s7 + $0x78] sm:$0xff]
        %v1875 = vld [vmem:[%s7 + $0x80] sm:$0xff]
        %v1876 = vld [vmem:[%s7 + $0x88] sm:$0xff]
        %v1877 = vld [vmem:[%s7 + $0x90] sm:$0xff]
        %v1878 = vld [vmem:[%s7 + $0x98] sm:$0xff]
        %v1879 = vld [vmem:[%s7 + $0xa0] sm:$0xff]
        %v1880 = vld [vmem:[%s7 + $0xa8] sm:$0xff]
        %v1881 = vld [vmem:[%s7 + $0xb0] sm:$0xff]
        %v1882 = vld [vmem:[%s7 + $0xb8] sm:$0xff]
        %v1883 = vld [vmem:[%s7 + $0xc0] sm:$0xff]
        %v1884 = vld [vmem:[%s7 + $0xc8] sm:$0xff]
        %v1885 = vld [vmem:[%s7 + $0xd0] sm:$0xff]
        %v1886 = vld [vmem:[%s7 + $0xd8] sm:$0xff]
        %v1887 = vld [vmem:[%s7 + $0xe0] sm:$0xff]
        %v1888 = vld [vmem:[%s7 + $0xe8] sm:$0xff]
        %v1889 = vld [vmem:[%s7 + $0xf0] sm:$0xff]
        %v1890 = vld [vmem:[%s7 + $0xf8] sm:$0xff]
        %v1891 = vld [vmem:[%s7 + $0x100] sm:$0xff]
        %v1892 = vld [vmem:[%s7 + $0x108] sm:$0xff]
        %v1893 = vld [vmem:[%s7 + $0x110] sm:$0xff]
        %v1894 = vld [vmem:[%s7 + $0x118] sm:$0xff]
        %v1895 = vld [vmem:[%s7 + $0x120] sm:$0xff]
        %v1896 = vld [vmem:[%s7 + $0x128] sm:$0xff]
        %v1897 = vld [vmem:[%s7 + $0x130] sm:$0xff]
        %v1898 = vld [vmem:[%s7 + $0x138] sm:$0xff]
        %v1899 = vld [vmem:[%s7 + $0x140] sm:$0xff]
        %v1900 = vld [vmem:[%s7 + $0x148] sm:$0xff]
        %v1901 = vld [vmem:[%s7 + $0x150] sm:$0xff]
        %v1902 = vld [vmem:[%s7 + $0x158] sm:$0xff]
        %v1903 = vld [vmem:[%s7 + $0x160] sm:$0xff]
        %v1904 = vld [vmem:[%s7 + $0x168] sm:$0xff]
        %v1905 = vld [vmem:[%s7 + $0x170] sm:$0xff]
        %v1906 = vld [vmem:[%s7 + $0x178] sm:$0xff]
        %v1907 = vld [vmem:[%s7 + $0x180] sm:$0xff]
        %v1908 = vld [vmem:[%s7 + $0x188] sm:$0xff]
        %v1909 = vld [vmem:[%s7 + $0x190] sm:$0xff]
        %v1910 = vld [vmem:[%s7 + $0x198] sm:$0xff]
        %v1911 = vld [vmem:[%s7 + $0x1a0] sm:$0xff]
        %v1912 = vld [vmem:[%s7 + $0x1a8] sm:$0xff]
        %v1913 = vld [vmem:[%s7 + $0x1b0] sm:$0xff]
        %v1914 = vld [vmem:[%s7 + $0x1b8] sm:$0xff]
        %v1915 = vld [vmem:[%s7 + $0x1c0] sm:$0xff]
        %v1916 = vld [vmem:[%s7 + $0x1c8] sm:$0xff]
        %v1917 = vld [vmem:[%s7 + $0x1d0] sm:$0xff]
        %v1918 = vld [vmem:[%s7 + $0x1d8] sm:$0xff]
        %v1919 = vld [vmem:[%s7 + $0x1e0] sm:$0xff]
        %v1920 = vld [vmem:[%s7 + $0x1e8] sm:$0xff]
        %v1921 = vld [vmem:[%s7 + $0x1f0] sm:$0xff]
        %v1922 = vld [vmem:[%s7 + $0x1f8] sm:$0xff]
        %v1923 = vld [vmem:[%s8] sm:$0x3]
        %v1925 = vlaneseq
        %v1926 = vshrl.u32 %v1925, 7
        %v1927 = vsub.s32 0, %v1926
        %v1928 = vrot.slane %v1923, %v1927
        %v1929 = vlaneseq
        %v1930 = vshrl.u32 %v1929, 7
        %v1931 = vsub.s32 1, %v1930
        %v1932 = vrot.slane %v1923, %v1931
        %1935 = vmatprep.subr.mxu0 %v1860
        %1936 = vmatpush1.msra.mxu0 %v1859
        %1937 = vmatprep.subr.mxu0 %v1862
        %1938 = vmatpush1.msra.mxu0 %v1861
        %1939 = vmatprep.subr.mxu0 %v1864
        %1940 = vmatpush1.msra.mxu0 %v1863
        %1941 = vmatprep.subr.mxu0 %v1866
        %1942 = vmatpush1.msra.mxu0 %v1865
        %1943 = vmatprep.subr.mxu0 %v1868
        %1944 = vmatpush1.msra.mxu0 %v1867
        %1945 = vmatprep.subr.mxu0 %v1870
        %1946 = vmatpush1.msra.mxu0 %v1869
        %1947 = vmatprep.subr.mxu0 %v1872
        %1948 = vmatpush1.msra.mxu0 %v1871
        %1949 = vmatprep.subr.mxu0 %v1874
        %1950 = vmatpush1.msra.mxu0 %v1873
        %1951 = vmatprep.subr.mxu0 %v1876
        %1952 = vmatpush1.msra.mxu0 %v1875
        %1953 = vmatprep.subr.mxu0 %v1878
        %1954 = vmatpush1.msra.mxu0 %v1877
        %1955 = vmatprep.subr.mxu0 %v1880
        %1956 = vmatpush1.msra.mxu0 %v1879
        %1957 = vmatprep.subr.mxu0 %v1882
        %1958 = vmatpush1.msra.mxu0 %v1881
        %1959 = vmatprep.subr.mxu0 %v1884
        %1960 = vmatpush1.msra.mxu0 %v1883
        %1961 = vmatprep.subr.mxu0 %v1886
        %1962 = vmatpush1.msra.mxu0 %v1885
        %1963 = vmatprep.subr.mxu0 %v1888
        %1964 = vmatpush1.msra.mxu0 %v1887
        %1965 = vmatprep.subr.mxu0 %v1890
        %1966 = vmatpush1.msra.mxu0 %v1889
        %1967 = vmatprep.subr.mxu0 %v1892
        %1968 = vmatpush1.msra.mxu0 %v1891
        %1969 = vmatprep.subr.mxu0 %v1894
        %1970 = vmatpush1.msra.mxu0 %v1893
        %1971 = vmatprep.subr.mxu0 %v1896
        %1972 = vmatpush1.msra.mxu0 %v1895
        %1973 = vmatprep.subr.mxu0 %v1898
        %1974 = vmatpush1.msra.mxu0 %v1897
        %1975 = vmatprep.subr.mxu0 %v1900
        %1976 = vmatpush1.msra.mxu0 %v1899
        %1977 = vmatprep.subr.mxu0 %v1902
        %1978 = vmatpush1.msra.mxu0 %v1901
        %1979 = vmatprep.subr.mxu0 %v1904
        %1980 = vmatpush1.msra.mxu0 %v1903
        %1981 = vmatprep.subr.mxu0 %v1906
        %1982 = vmatpush1.msra.mxu0 %v1905
        %1983 = vmatprep.subr.mxu0 %v1908
        %1984 = vmatpush1.msra.mxu0 %v1907
        %1985 = vmatprep.subr.mxu0 %v1910
        %1986 = vmatpush1.msra.mxu0 %v1909
        %1987 = vmatprep.subr.mxu0 %v1912
        %1988 = vmatpush1.msra.mxu0 %v1911
        %1989 = vmatprep.subr.mxu0 %v1914
        %1990 = vmatpush1.msra.mxu0 %v1913
        %1991 = vmatprep.subr.mxu0 %v1916
        %1992 = vmatpush1.msra.mxu0 %v1915
        %1993 = vmatprep.subr.mxu0 %v1918
        %1994 = vmatpush1.msra.mxu0 %v1917
        %1995 = vmatprep.subr.mxu0 %v1920
        %1996 = vmatpush1.msra.mxu0 %v1919
        %1997 = vmatprep.subr.mxu0 %v1922
        %1998 = vmatpush1.msra.mxu0 %v1921
        %1999 = vmatprep.mubr.f32.mxu0 %v1858
        %2000 = vmatmul.mubr.f32.gmra.mrb[0].mxu0 %v1857
        %v2001 = vpop.f32.mrb[0].mxu0
        %v2002 = vadd.f32 %v1928, %v2001
        %v2003 = vpop.f32.mrb[0].mxu0
        %v2004 = vadd.f32 %v1932, %v2003
        %2005 = vdwg.mxu0
        %v2006 = vtanh.pop %v2002
        %v2007 = vtanh.pop %v2004
        %v2008 = vld [vmem:[%s9] sm:$0xff]
        %v2009 = vld [vmem:[%s9 + $0x8] sm:$0xff]
        %v2010 = vld [vmem:[%s9 + $0x10] sm:$0xff]
        %v2011 = vld [vmem:[%s9 + $0x18] sm:$0xff]
        %v2012 = vld [vmem:[%s9 + $0x20] sm:$0xff]
        %v2013 = vld [vmem:[%s9 + $0x28] sm:$0xff]
        %v2014 = vld [vmem:[%s9 + $0x30] sm:$0xff]
        %v2015 = vld [vmem:[%s9 + $0x38] sm:$0xff]
        %v2016 = vld [vmem:[%s9 + $0x40] sm:$0xff]
        %v2017 = vld [vmem:[%s9 + $0x48] sm:$0xff]
        %v2018 = vld [vmem:[%s9 + $0x50] sm:$0xff]
        %v2019 = vld [vmem:[%s9 + $0x58] sm:$0xff]
        %v2020 = vld [vmem:[%s9 + $0x60] sm:$0xff]
        %v2021 = vld [vmem:[%s9 + $0x68] sm:$0xff]
        %v2022 = vld [vmem:[%s9 + $0x70] sm:$0xff]
        %v2023 = vld [vmem:[%s9 + $0x78] sm:$0xff]
        %v2024 = vld [vmem:[%s9 + $0x80] sm:$0xff]
        %v2025 = vld [vmem:[%s9 + $0x88] sm:$0xff]
        %v2026 = vld [vmem:[%s9 + $0x90] sm:$0xff]
        %v2027 = vld [vmem:[%s9 + $0x98] sm:$0xff]
        %v2028 = vld [vmem:[%s9 + $0xa0] sm:$0xff]
        %v2029 = vld [vmem:[%s9 + $0xa8] sm:$0xff]
        %v2030 = vld [vmem:[%s9 + $0xb0] sm:$0xff]
        %v2031 = vld [vmem:[%s9 + $0xb8] sm:$0xff]
        %v2032 = vld [vmem:[%s9 + $0xc0] sm:$0xff]
        %v2033 = vld [vmem:[%s9 + $0xc8] sm:$0xff]
        %v2034 = vld [vmem:[%s9 + $0xd0] sm:$0xff]
        %v2035 = vld [vmem:[%s9 + $0xd8] sm:$0xff]
        %v2036 = vld [vmem:[%s9 + $0xe0] sm:$0xff]
        %v2037 = vld [vmem:[%s9 + $0xe8] sm:$0xff]
        %v2038 = vld [vmem:[%s9 + $0xf0] sm:$0xff]
        %v2039 = vld [vmem:[%s9 + $0xf8] sm:$0xff]
        %v2040 = vld [vmem:[%s10] sm:$0x1]
        %2041 = vmatprep.subr.mxu0 0.0
        %2042 = vmatpush1.msra.mxu0 %v2008
        %2043 = vmatprep.subr.mxu0 0.0
        %2044 = vmatpush1.msra.mxu0 %v2009
        %2045 = vmatprep.subr.mxu0 0.0
        %2046 = vmatpush1.msra.mxu0 %v2010
        %2047 = vmatprep.subr.mxu0 0.0
        %2048 = vmatpush1.msra.mxu0 %v2011
        %2049 = vmatprep.subr.mxu0 0.0
        %2050 = vmatpush1.msra.mxu0 %v2012
        %2051 = vmatprep.subr.mxu0 0.0
        %2052 = vmatpush1.msra.mxu0 %v2013
        %2053 = vmatprep.subr.mxu0 0.0
        %2054 = vmatpush1.msra.mxu0 %v2014
        %2055 = vmatprep.subr.mxu0 0.0
        %2056 = vmatpush1.msra.mxu0 %v2015
        %2057 = vmatprep.subr.mxu0 0.0
        %2058 = vmatpush1.msra.mxu0 %v2016
        %2059 = vmatprep.subr.mxu0 0.0
        %2060 = vmatpush1.msra.mxu0 %v2017
        %2061 = vmatprep.subr.mxu0 0.0
        %2062 = vmatpush1.msra.mxu0 %v2018
        %2063 = vmatprep.subr.mxu0 0.0
        %2064 = vmatpush1.msra.mxu0 %v2019
        %2065 = vmatprep.subr.mxu0 0.0
        %2066 = vmatpush1.msra.mxu0 %v2020
        %2067 = vmatprep.subr.mxu0 0.0
        %2068 = vmatpush1.msra.mxu0 %v2021
        %2069 = vmatprep.subr.mxu0 0.0
        %2070 = vmatpush1.msra.mxu0 %v2022
        %2071 = vmatprep.subr.mxu0 0.0
        %2072 = vmatpush1.msra.mxu0 %v2023
        %2073 = vmatprep.subr.mxu0 0.0
        %2074 = vmatpush1.msra.mxu0 %v2024
        %2075 = vmatprep.subr.mxu0 0.0
        %2076 = vmatpush1.msra.mxu0 %v2025
        %2077 = vmatprep.subr.mxu0 0.0
        %2078 = vmatpush1.msra.mxu0 %v2026
        %2079 = vmatprep.subr.mxu0 0.0
        %2080 = vmatpush1.msra.mxu0 %v2027
        %2081 = vmatprep.subr.mxu0 0.0
        %2082 = vmatpush1.msra.mxu0 %v2028
        %2083 = vmatprep.subr.mxu0 0.0
        %2084 = vmatpush1.msra.mxu0 %v2029
        %2085 = vmatprep.subr.mxu0 0.0
        %2086 = vmatpush1.msra.mxu0 %v2030
        %2087 = vmatprep.subr.mxu0 0.0
        %2088 = vmatpush1.msra.mxu0 %v2031
        %2089 = vmatprep.subr.mxu0 0.0
        %2090 = vmatpush1.msra.mxu0 %v2032
        %2091 = vmatprep.subr.mxu0 0.0
        %2092 = vmatpush1.msra.mxu0 %v2033
        %2093 = vmatprep.subr.mxu0 0.0
        %2094 = vmatpush1.msra.mxu0 %v2034
        %2095 = vmatprep.subr.mxu0 0.0
        %2096 = vmatpush1.msra.mxu0 %v2035
        %2097 = vmatprep.subr.mxu0 0.0
        %2098 = vmatpush1.msra.mxu0 %v2036
        %2099 = vmatprep.subr.mxu0 0.0
        %2100 = vmatpush1.msra.mxu0 %v2037
        %2101 = vmatprep.subr.mxu0 0.0
        %2102 = vmatpush1.msra.mxu0 %v2038
        %2103 = vmatprep.subr.mxu0 0.0
        %2104 = vmatpush1.msra.mxu0 %v2039
        %2105 = vmatprep.mubr.f32.mxu0 %v2007
        %2106 = vmatmul.mubr.f32.gmra.mrb[0].mxu0 %v2006
        %v2107 = vpop.f32.mrb[0].mxu0
        %v2108 = vadd.f32 %v2040, %v2107
        %v2109 = vpop.f32.mrb[0].mxu0
        %2110 = vdwg.mxu0
        %vm2111 = vcmask 57344
        %2112 = vst.msk [vmem:[%s444] sm:$0x1] %vm2111, %v2108
        %v2113 = vsel %vm2111, %v2108, -inf
        %2114 = vmax.xlane.f32.xlu0 %v2113
        %v2115 = vpop.xlane.xlu0 %2114
        %v2116 = vsub.f32 %v2108, %v2115
        %v2117 = vmul.f32 %v2116, 1.442695
        %v2118 = vpow.pop %v2117
        %v2119 = vsel %vm2111, %v2118, 0.0
        %2120 = vadd.xlane.f32.xlu0 %v2119
        %v2121 = vpop.xlane.xlu0 %2120
        %v2122 = vlog2.pop %v2121
        %v2123 = vmul.f32 %v2122, 0.6931472
        %v2124 = vadd.f32 %v2123, %v2115
        %v2125 = vsub.f32 %v2108, %v2124
        %v2126 = vlaneseq
        %v2127 = vand.u32 %v2126, 127
        %v2128 = vld [vmem:[%s457] sm:$0x1]
        %2129 = vset.pattern.permute.xlu0 0
        %2130 = vperm.xlu0 %2129, %v2128
        %v2131 = vpop.permute.xlu0 %2130
        %v2132 = vlaneseq
        %v2133 = vshrl.u32 %v2132, 7
        %v2134 = vsub.s32 0, %v2133
        %v2135 = vrot.slane %v2131, %v2134
        %vm2136 = vcmp.eq.s32.totalorder %v2127, %v2135
        %v2137 = vsel %vm2136, %v2125, 0.0
        %v2138 = vsel %vm2111, %v2137, 0.0
        %2139 = vadd.xlane.f32.xlu0 %v2138
        %v2140 = vpop.xlane.xlu0 %2139
        %vm2141 = vcmask 0
        %2142 = vst.msk [vmem:[%s460] sm:$0x1] %vm2141, %v2140
        %s2143 = sand.u32 %s298, 1
        %s2144 = scalar_lea.sflag [#allocation3], %s2143
        %s2145 = sand.u32 %s298, 1
        %s2146 = scalar_lea.vmem [#allocation2], %s2145
        %p2147 = scmp.lt.s32.totalorder %s28, 1
        %s2148 = scalar_select %p2147, %s28, 1
        %s2149 = scalar_lea.vmem %s13, %s2148
        // Predicated region
        $region69: #{cnn_categorical_actor_forward.1} parent=67 // pred_check
          %p2150 = pneg %p308
        $region70: #{cnn_categorical_actor_forward.1} parent=67 // pred_check_branch
          %2152 = sbr.rel (%p2150) target = $region72
        $region71: #{cnn_categorical_actor_forward.1} parent=67 // pred_region
          %s2154 = ssub.s32 16, 16
          %2155 = vsyncadd %s2144, %s2154
          %s2156 = smul.addr %s28, 16
          %s2157 = scalar_lea.hbm %s12, %s2156
          %s2159 = sshll.u32 %s2146, 4
          %s2160 = int_to_ptr.vmem [resolvable:$true] %s2159
          %2162 = dma.vmem_to_hbm [thread:$0]  %s2160, 16, %s2157, %s2144
        $region72: #{cnn_categorical_actor_forward.1} parent=67 // pred_fallthru
          _
        // Predicated region
        $region73: #{cnn_categorical_actor_forward.1} parent=67 // pred_check
          %p2163 = pneg %p334
        $region74: #{cnn_categorical_actor_forward.1} parent=67 // pred_check_branch
          %2165 = sbr.rel (%p2163) target = $region76
        $region75: #{cnn_categorical_actor_forward.1} parent=67 // pred_region
          _
        $region76: #{cnn_categorical_actor_forward.1} parent=67 // pred_fallthru
          _
      $region68: #{cnn_categorical_actor_forward.1} parent=5 // pred_fallthru
        _
      %p2166 = scmp.le.s32.totalorder 2, %s23
      // Predicated region
      $region77: #{cnn_categorical_actor_forward.1} parent=5 // pred_check
        %p2167 = pneg %p2166
      $region78: #{cnn_categorical_actor_forward.1} parent=5 // pred_check_branch
        %2169 = sbr.rel (%p2167) target = $region80
      $region79: #{cnn_categorical_actor_forward.1} parent=5 // pred_region
        %s2170 = ssub.s32 %s23, 2
        // Predicated region
        $region81: #{cnn_categorical_actor_forward.1} parent=79 // pred_check
          %p2171 = pneg %p314
        $region82: #{cnn_categorical_actor_forward.1} parent=79 // pred_check_branch
          %2173 = sbr.rel (%p2171) target = $region84
        $region83: #{cnn_categorical_actor_forward.1} parent=79 // pred_region
          %s2174 = sand.u32 %s299, 1
          %s2175 = scalar_lea.sflag [#allocation3], %s2174
          %s2176 = sand.u32 %s299, 1
          %s2177 = scalar_lea.vmem [#allocation2], %s2176
          %2178 = dma.done %s2175, 16
        $region84: #{cnn_categorical_actor_forward.1} parent=79 // pred_fallthru
          _
        // Predicated region
        $region85: #{cnn_categorical_actor_forward.1} parent=79 // pred_check
          %p2179 = pneg %p340
        $region86: #{cnn_categorical_actor_forward.1} parent=79 // pred_check_branch
          %2181 = sbr.rel (%p2179) target = $region88
        $region87: #{cnn_categorical_actor_forward.1} parent=79 // pred_region
          %p2182 = scmp.lt.s32.totalorder %s29, 1
          %s2183 = scalar_select %p2182, %s29, 1
          %s2184 = scalar_lea.vmem %s13, %s2183
        $region88: #{cnn_categorical_actor_forward.1} parent=79 // pred_fallthru
          _
      $region80: #{cnn_categorical_actor_forward.1} parent=5 // pred_fallthru
        _
    $region6: #{cnn_categorical_actor_forward.1} parent=1 // loop_footer
      %s27 = sadd.s32 1, %s23
    $region7: #{cnn_categorical_actor_forward.1} parent=1 // loop_footer_branch
      %22 = sbr.rel target = $region3
    $region8: #{cnn_categorical_actor_forward.1} parent=1 // loop_exit
      _
    %2185 = vsyncpa [#allocation3], 1
    %s2186 = scalar_lea.sflag [#allocation3], 1
    %2187 = vsyncpa %s2186, 1

</llo_original>
